<compile_context>
chip_gen: v6e
topology: v6e:2x2x1
jax: 0.10.0
libtpu: 0.0.40
codegen_flags: <defaults>
</compile_context>

<pallas_src>
import jax
import jax.numpy as jnp
import numpy as np
from jax.experimental import pallas as pl
from jax.experimental.pallas import tpu as pltpu

NUM_JOINTS = 16          # wrist + 15 finger joints
JC = NUM_JOINTS * 3      # 48 output channels (rtn_wrist=True)
MANO_PARENTS = (-1, 0, 1, 2, 0, 4, 5, 0, 7, 8, 0, 10, 11, 0, 13, 14)


# ----------------------------------------------------------------------------
# Pallas kernel: per-batch affine transform of all grid points into all joint
# frames + per-batch zero-pose masking.
# ----------------------------------------------------------------------------
def _coord_kernel(mask_ref, a_ref, x_ref, o_ref):
    # mask_ref: (N,) f32 in SMEM      (per-batch 1-zero_mask scalar)
    # a_ref:    (1, 48, 4) f32        (packed [R | t] rows, joint-major)
    # x_ref:    (1, 3, TP) f32        (points, lane axis = points)
    # o_ref:    (1, 48, TP)
    n = pl.program_id(0)
    a = a_ref[0] * mask_ref[n]              # (48, 4)  mask applied pre-transform
    x = x_ref[0]                            # (3, TP)
    # Unrolled broadcast-FMA on the VPU; a (48,4)x(4,TP) MXU dot would be
    # >96% zero padding in the contraction and gains nothing (mem-bound).
    out = (a[:, 0:1] * x[0:1, :]
           + a[:, 1:2] * x[1:2, :]
           + a[:, 2:3] * x[2:3, :]
           + a[:, 3:4])                     # translation column, broadcast add
    o_ref[0] = out.astype(o_ref.dtype)


def coord_field_pallas(A, X, mask, *, tp_cap=4096, out_dtype=jnp.float32):
    """A: (N, 48, 4), X: (N, 3, P), mask: (N,) -> (N, 48, P)."""
    N, jc, _ = A.shape
    _, _, P = X.shape

    # Tile choice: as big as possible (tiny per-step DMA otherwise makes the
    # 0.35 us pipeline overhead dominate); pad P up to a tile multiple.
    p128 = pl.cdiv(P, 128) * 128
    tp = min(tp_cap, p128)
    P_pad = pl.cdiv(P, tp) * tp
    if P_pad != P:
        X = jnp.pad(X, ((0, 0), (0, 0), (0, P_pad - P)))

    grid = (N, P_pad // tp)
    out = pl.pallas_call(
        _coord_kernel,
        out_shape=jax.ShapeDtypeStruct((N, jc, P_pad), out_dtype),
        grid_spec=pltpu.PrefetchScalarGridSpec(
            num_scalar_prefetch=0,
            grid=grid,
            in_specs=[
                pl.BlockSpec(memory_space=pltpu.MemorySpace.SMEM),     # mask
                pl.BlockSpec((1, jc, 4), lambda n, p: (n, 0, 0)),      # A
                pl.BlockSpec((1, 3, tp), lambda n, p: (n, 0, p)),      # X
            ],
            out_specs=pl.BlockSpec((1, jc, tp), lambda n, p: (n, 0, p)),
        ),
        compiler_params=pltpu.CompilerParams(
            dimension_semantics=("parallel", "parallel")),
    )(mask, A, X)
    if P_pad != P:
        out = out[:, :, :P]
    return out


# ----------------------------------------------------------------------------
# Plain-JAX glue: synthetic MANO-style kinematics -> per-joint transforms.
# ----------------------------------------------------------------------------
def _rodrigues(aa):
    """Axis-angle (..., 3) -> rotation matrices (..., 3, 3). Exact identity at 0."""
    sq = jnp.sum(aa * aa, axis=-1, keepdims=True)
    angle = jnp.sqrt(sq)
    safe = jnp.where(sq > 1e-12, angle, jnp.ones_like(angle))
    axis = aa / safe                                    # -> 0 vector when aa == 0
    ax, ay, az = axis[..., 0], axis[..., 1], axis[..., 2]
    zeros = jnp.zeros_like(ax)
    K = jnp.stack([
        jnp.stack([zeros, -az, ay], axis=-1),
        jnp.stack([az, zeros, -ax], axis=-1),
        jnp.stack([-ay, ax, zeros], axis=-1),
    ], axis=-2)
    c = jnp.cos(angle)[..., None]
    s = jnp.sin(angle)[..., None]
    outer = axis[..., :, None] * axis[..., None, :]
    eye = jnp.eye(3, dtype=aa.dtype)
    return c * eye + (1.0 - c) * outer + s * K          # aa==0 -> exactly I


def _rt_to_homo(R, t):
    batch = R.shape[:-2]
    top = jnp.concatenate([R, t[..., :, None]], axis=-1)                 # (...,3,4)
    bot = jnp.broadcast_to(jnp.array([0., 0., 0., 1.], R.dtype), batch + (1, 4))
    return jnp.concatenate([top, bot], axis=-2)


def _inverse_rt(T):
    R = T[..., :3, :3]
    t = T[..., :3, 3]
    Rinv = jnp.swapaxes(R, -1, -2)
    tinv = -jnp.einsum('...ij,...j->...i', Rinv, t)
    return _rt_to_homo(Rinv, tinv)


def _rest_joints():
    # deterministic synthetic rest-pose skeleton (wrist + 5 fingers * 3 joints)
    joints = [[0.0, 0.0, 0.0]]
    for f in range(5):
        for k in range(3):
            joints.append([0.03 * (k + 1), 0.02 * (f - 2), 0.005 * f])
    return jnp.asarray(joints, dtype=jnp.float32)          # (16, 3)


def _forward_kinematics(hA):
    """hA (N, 45) axis-angle -> hTjs (N, 16, 4, 4) joint-to-hand transforms."""
    N = hA.shape[0]
    rest = _rest_joints()
    rots = _rodrigues(hA.reshape(N, 15, 3))                               # (N,15,3,3)
    eye = jnp.broadcast_to(jnp.eye(3, dtype=hA.dtype), (N, 1, 3, 3))
    rots = jnp.concatenate([eye, rots], axis=1)                           # (N,16,3,3)
    transforms = []
    for j in range(NUM_JOINTS):
        p = MANO_PARENTS[j]
        if p < 0:
            t = jnp.broadcast_to(rest[j], (N, 3))
            T = _rt_to_homo(rots[:, j], t)
        else:
            t = jnp.broadcast_to(rest[j] - rest[p], (N, 3))
            T = jnp.einsum('nab,nbc->nac', transforms[p],
                           _rt_to_homo(rots[:, j], t))
        transforms.append(T)
    hTjs = jnp.stack(transforms, axis=1)                                  # (N,16,4,4)
    hJoints = hTjs[..., :3, 3]                                            # (N,16,3)
    return hTjs, hJoints


def coord_field_forward(hA, H, nXyz, rtn_wrist=True, out_dtype=jnp.float32):
    """JAX/Pallas equivalent of CoordField.forward(hA, H, nXyz, rtn_wrist)."""
    N = hA.shape[0]
    hA = hA.astype(jnp.float32)
    nXyz = nXyz.astype(jnp.float32)

    # rearrange 'n d h w c -> n c (d h w)' (+ trilinear resize only if needed)
    D_in, H_in, W_in = nXyz.shape[1:4]
    if (D_in, H_in, W_in) == (H, H, H):
        x = jnp.transpose(nXyz.reshape(N, H * H * H, 3), (0, 2, 1))       # (N,3,P)
    else:
        x = jnp.transpose(nXyz, (0, 4, 1, 2, 3))                          # (N,3,D,H,W)
        # TODO(synk): jax.image.resize('linear') vs F.interpolate('trilinear',
        # align_corners=False) corner semantics are close but not verified bit-exact.
        x = jax.image.resize(x, (N, 3, H, H, H), method='linear')
        x = x.reshape(N, 3, H * H * H)
    P = H * H * H

    # hand kinematics (synthetic MANO stand-in), nTh / hTn, per-joint jsTn
    hTjs, hJoints = _forward_kinematics(hA)
    r = 0.2
    center = hJoints[:, 5] + jnp.array([0.0, -0.08, 0.0], jnp.float32)
    hTn = _rt_to_homo(jnp.broadcast_to(2.0 * r * jnp.eye(3, dtype=jnp.float32),
                                       (N, 3, 3)), center)               # inverse(nTh)
    jsTh = _inverse_rt(hTjs)                                              # (N,16,4,4)
    jsTn = jnp.einsum('njab,nbc->njac', jsTh, hTn)                        # (N,16,4,4)
    # TODO(synk): exact `iso=True` re-scaling of transform_nPoints_to_js and real
    # MANO rest joints are not reproducible without the MANO asset files.
    A = jsTn[:, :, :3, :].reshape(N, JC, 4)                               # (N,48,4)

    # mask_hA: zero out batches whose whole pose vector is exactly 0
    zero_mask = (jnp.sum(hA != 0, axis=-1) == 0).astype(jnp.float32)
    mask = 1.0 - zero_mask                                                # (N,)

    out = coord_field_pallas(A, x, mask, out_dtype=out_dtype)             # (N,48,P)
    out = out.reshape(N, JC, H, H, H)                                     # NCDHW
    if not rtn_wrist:
        out = out[:, 3:]
    return out, (A, x, mask)   # extras returned only for the reference check


if __name__ == "__main__":
    key = jax.random.PRNGKey(0)
    k_ha, k_xyz = jax.random.split(key)

    N, H_in = 2, 16
    hA = 0.2 * jax.random.normal(k_ha, (N, 45), dtype=jnp.float32)
    hA = hA.at[1].set(0.0)  # exercise the zero-pose mask path
    # synthetic normalized SDF-grid coordinates in [-1, 1]
    lin = jnp.linspace(-1.0, 1.0, H_in, dtype=jnp.float32)
    gx, gy, gz = jnp.meshgrid(lin, lin, lin, indexing='ij')
    grid = jnp.stack([gx, gy, gz], axis=-1)                               # (D,H,W,3)
    nXyz = jnp.broadcast_to(grid, (N, H_in, H_in, H_in, 3))
    nXyz = nXyz + 0.01 * jax.random.normal(k_xyz, nXyz.shape, dtype=jnp.float32)

    def check(H_out):
        out, (A, x, mask) = coord_field_forward(hA, H_out, nXyz, rtn_wrist=True)
        out = jax.block_until_ready(out)
        assert out.shape == (N, JC, H_out, H_out, H_out), out.shape
        # pure-JAX reference of the kernel's hot path
        ref = (jnp.einsum('njk,nkp->njp', A[:, :, :3], x) + A[:, :, 3:])
        ref = ref * mask[:, None, None]
        ref = ref.reshape(N, JC, H_out, H_out, H_out)
        np.testing.assert_allclose(np.asarray(out), np.asarray(ref),
                                   rtol=1e-5, atol=1e-5)
        assert float(jnp.abs(out[1]).max()) == 0.0   # masked batch is zeroed

    check(16)   # no-resize path, P = 4096 (single tile per batch)
    check(20)   # resize path, P = 8000 (exercises lane padding / multi-tile)

    print("KERNEL_OK")
</pallas_src>

<mosaic_0001>
module attributes {stable_mosaic.version = 11 : i64} {
  func.func @_coord_kernel(%arg0: i32, %arg1: i32, %arg2: memref<2xf32, #tpu.memory_space<smem>>, %arg3: memref<1x48x4xf32, #tpu.memory_space<vmem>>, %arg4: memref<1x3x4096xf32, #tpu.memory_space<vmem>>, %arg5: memref<1x48x4096xf32, #tpu.memory_space<vmem>>) attributes {dimension_semantics = [#tpu.dimension_semantics<parallel>, #tpu.dimension_semantics<parallel>], iteration_bounds = array<i64: 2, 1>, scalar_prefetch = 0 : i64, scratch_operands = 0 : i64, tpu.core_type = #tpu.core_type<tc>, window_params = [{transform_indices = @transform_0, window_bounds = array<i64: 2>}, {transform_indices = @transform_1, window_bounds = array<i64: 1, 48, 4>}, {transform_indices = @transform_2, window_bounds = array<i64: 1, 3, 4096>}, {transform_indices = @transform_3, window_bounds = array<i64: 1, 48, 4096>}]} {
    %c0 = arith.constant 0 : index
    %c0_0 = arith.constant 0 : index
    %c0_1 = arith.constant 0 : index
    %0 = vector.load %arg3[%c0, %c0_0, %c0_1] : memref<1x48x4xf32, #tpu.memory_space<vmem>>, vector<1x48x4xf32>
    %1 = vector.shape_cast %0 : vector<1x48x4xf32> to vector<48x4xf32>
    %2 = arith.index_cast %arg0 : i32 to index
    %3 = memref.load %arg2[%2] : memref<2xf32, #tpu.memory_space<smem>>
    %4 = vector.broadcast %3 : f32 to vector<48x4xf32>
    %5 = arith.mulf %1, %4 : vector<48x4xf32>
    %c0_2 = arith.constant 0 : index
    %c0_3 = arith.constant 0 : index
    %c0_4 = arith.constant 0 : index
    %6 = vector.load %arg4[%c0_2, %c0_3, %c0_4] : memref<1x3x4096xf32, #tpu.memory_space<vmem>>, vector<1x3x4096xf32>
    %7 = vector.shape_cast %6 : vector<1x3x4096xf32> to vector<3x4096xf32>
    %8 = vector.extract_strided_slice %5 {offsets = [0, 0], sizes = [48, 1], strides = [1, 1]} : vector<48x4xf32> to vector<48x1xf32>
    %9 = vector.extract_strided_slice %7 {offsets = [0, 0], sizes = [1, 4096], strides = [1, 1]} : vector<3x4096xf32> to vector<1x4096xf32>
    %10 = vector.broadcast %8 : vector<48x1xf32> to vector<48x4096xf32>
    %11 = vector.broadcast %9 : vector<1x4096xf32> to vector<48x4096xf32>
    %12 = arith.mulf %10, %11 : vector<48x4096xf32>
    %13 = vector.extract_strided_slice %5 {offsets = [0, 1], sizes = [48, 1], strides = [1, 1]} : vector<48x4xf32> to vector<48x1xf32>
    %14 = vector.extract_strided_slice %7 {offsets = [1, 0], sizes = [1, 4096], strides = [1, 1]} : vector<3x4096xf32> to vector<1x4096xf32>
    %15 = vector.broadcast %13 : vector<48x1xf32> to vector<48x4096xf32>
    %16 = vector.broadcast %14 : vector<1x4096xf32> to vector<48x4096xf32>
    %17 = arith.mulf %15, %16 : vector<48x4096xf32>
    %18 = arith.addf %12, %17 : vector<48x4096xf32>
    %19 = vector.extract_strided_slice %5 {offsets = [0, 2], sizes = [48, 1], strides = [1, 1]} : vector<48x4xf32> to vector<48x1xf32>
    %20 = vector.extract_strided_slice %7 {offsets = [2, 0], sizes = [1, 4096], strides = [1, 1]} : vector<3x4096xf32> to vector<1x4096xf32>
    %21 = vector.broadcast %19 : vector<48x1xf32> to vector<48x4096xf32>
    %22 = vector.broadcast %20 : vector<1x4096xf32> to vector<48x4096xf32>
    %23 = arith.mulf %21, %22 : vector<48x4096xf32>
    %24 = arith.addf %18, %23 : vector<48x4096xf32>
    %25 = vector.extract_strided_slice %5 {offsets = [0, 3], sizes = [48, 1], strides = [1, 1]} : vector<48x4xf32> to vector<48x1xf32>
    %26 = vector.broadcast %25 : vector<48x1xf32> to vector<48x4096xf32>
    %27 = arith.addf %24, %26 : vector<48x4096xf32>
    %c0_5 = arith.constant 0 : index
    %c0_6 = arith.constant 0 : index
    %c0_7 = arith.constant 0 : index
    %28 = vector.load %arg5[%c0_5, %c0_6, %c0_7] : memref<1x48x4096xf32, #tpu.memory_space<vmem>>, vector<1x48x4096xf32>
    %29 = vector.shape_cast %28 : vector<1x48x4096xf32> to vector<48x4096xf32>
    %30 = vector.shape_cast %27 : vector<48x4096xf32> to vector<1x48x4096xf32>
    tpu.vector_store %arg5[%c0_5, %c0_6, %c0_7], %30 {strides = array<i32>} : memref<1x48x4096xf32, #tpu.memory_space<vmem>>, vector<1x48x4096xf32>,
    return
  }
  func.func @transform_0(%arg0: i32, %arg1: i32) -> i32 {
    %c0_i32 = arith.constant 0 : i32
    %c0_i32_0 = arith.constant 0 : i32
    return %c0_i32 : i32
  }
  func.func @transform_1(%arg0: i32, %arg1: i32) -> (i32, i32, i32) {
    %c0_i32 = arith.constant 0 : i32
    %c0_i32_0 = arith.constant 0 : i32
    %c0_i32_1 = arith.constant 0 : i32
    return %arg0, %c0_i32, %c0_i32_0 : i32, i32, i32
  }
  func.func @transform_2(%arg0: i32, %arg1: i32) -> (i32, i32, i32) {
    %c0_i32 = arith.constant 0 : i32
    %c0_i32_0 = arith.constant 0 : i32
    return %arg0, %c0_i32, %arg1 : i32, i32, i32
  }
  func.func @transform_3(%arg0: i32, %arg1: i32) -> (i32, i32, i32) {
    %c0_i32 = arith.constant 0 : i32
    %c0_i32_0 = arith.constant 0 : i32
    return %arg0, %c0_i32, %arg1 : i32, i32, i32
  }
}

</mosaic_0001>

<llo_original>
// kernel: tpu_custom_call.1
$region0: #{tpu_custom_call.1}
  #allocation0 [shape = 'u32[]', space=smem, size = 0x4, offset = 0x4, fixed_abs, tag = 'smem constant byte address 0x4 - core index']
  #allocation1 [shape = 'u32[144,128]{1,0:T(1,128)}', space=vmem, size = 0x12000, scoped, tag = 'internal scratch']
  %s0 = inlined_call_operand.hbm [shape: f32[2], index: 0, kind: input, shape index: {}]
  %s1 = inlined_call_operand.vmem [shape: f32[2,48,4], index: 1, kind: input, shape index: {}]
  %s2 = inlined_call_operand.vmem [shape: f32[2,3,4096], index: 2, kind: input, shape index: {}]
  %s3 = inlined_call_operand.hbm [shape: f32[2,48,4096], index: 3, kind: output, shape index: {}]
  %s4 = sld [smem:[#allocation0]]
  $region49: #{tpu_custom_call.1} parent=0
    _
  %s6 = ssub.s32 1, %s4
  %s7 = scalar_select 0, %s6, %s4
  $region1: #{tpu_custom_call.1} parent=0
    #allocation2 [shape = 'u8[512]{0}', space=smem, size = 0x200, scoped, tag = 'input window, operand 0, single buffered']
    #allocation3 [shape = 's32[2]{0}', space=sflag, size = 0x8, scoped, tag = 'scoped memory for tpu_custom_call.1']
    #allocation4 [shape = 's32[2]{0}', space=sflag, size = 0x8, scoped, tag = 'scoped memory for tpu_custom_call.1']
    #allocation5 [shape = 'u8[1572864]{0}', space=vmem, size = 0x180000, scoped, tag = 'output window, operand 0']
    %8 = vsyncpa [#allocation4], 0
    %9 = vsyncpa [#allocation3], 0
    %s10 = scalar_lea.sflag [#allocation3], 1
    %11 = vsyncpa %s10, 0
    loop: start=0, step=1, limit=4
    $region2: #{tpu_custom_call.1} parent=1 // loop_pre_header
      _
    $region3: #{tpu_custom_call.1} parent=1 // loop_header
      %s13 = sphi 0, %s17
      %p14 = scmp.ge.s32.totalorder %s13, 4
      %s20 = sphi 0, %s32
      %s21 = sphi 0, %s28
      %s22 = sphi 0, %s20
      %s23 = sphi 0, %s21
      %s24 = sphi 0, %s22
      %s25 = sphi 0, %s23
      %s33 = sphi 0, %s33
      %s35 = sphi 0, %s33
      %s36 = sphi 0, %s35
      %s50 = sphi 0, %s36
      %s56 = sphi 0, %s58
      %s59 = sphi 0, %s56
      %s60 = sphi 0, %s59
      %s76 = sphi 0, %s60
      %s84 = sphi 0, %s86
      %s87 = sphi 0, %s84
      %s88 = sphi 0, %s87
      %s104 = sphi 0, %s88
      %s112 = sphi 0, %s114
      %s115 = sphi 0, %s112
      %s116 = sphi 0, %s115
      %s132 = sphi 0, %s116
    $region4: #{tpu_custom_call.1} parent=1 // loop_header_branch
      %16 = sbr.rel (%p14) target = $region8
    $region5: #{tpu_custom_call.1} parent=1 // loop_body
      %s18 = ssub.s32 %s13, 1
      %s19 = ssub.s32 %s13, 2
      %s26 = sadd.s32 1, %s21
      %p27 = scmp.ge.s32.totalorder %s26, 1
      %s28 = scalar_select %p27, 0, %s26
      %s29 = sadd.s32 1, %s20
      %s30 = scalar_select %p27, %s29, %s20
      %p31 = scmp.ge.s32.totalorder %s30, 2
      %s32 = scalar_select %p31, 0, %s30
      %s34 = sadd.s32 %s33, 1
      %p37 = scmp.eq.s32.totalorder %s13, 1
      %p38 = scmp.ne.s32.totalorder %s33, %s35
      %p39 = scmp.eq.s32.totalorder %s13, 0
      %p40 = por %p38, %p39
      %p41 = scmp.ne.s32.totalorder %s33, %s35
      %p42 = scmp.eq.s32.totalorder %s18, 1
      %p43 = por %p41, %p42
      %p44 = scmp.ne.s32.totalorder %s35, %s36
      %p45 = scmp.eq.s32.totalorder %s18, 0
      %p46 = por %p44, %p45
      %p47 = scmp.ne.s32.totalorder %s35, %s36
      %p48 = scmp.eq.s32.totalorder %s19, 1
      %p49 = por %p47, %p48
      %p51 = scmp.ne.s32.totalorder %s36, %s50
      %p52 = scmp.eq.s32.totalorder %s19, 0
      %p53 = por %p51, %p52
      %s54 = ssub.s32 %s20, %s32
      %p55 = scmp.eq.s32.totalorder %s54, 0
      %s57 = sadd.s32 %s56, 1
      %s58 = scalar_select %p55, %s56, %s57
      %p61 = pneg %p55
      %p62 = scmp.eq.s32.totalorder %s13, 1
      %p63 = por %p61, %p62
      %p64 = scmp.ne.s32.totalorder %s56, %s59
      %p65 = scmp.eq.s32.totalorder %s13, 0
      %p66 = por %p64, %p65
      %p67 = scmp.ne.s32.totalorder %s56, %s59
      %p68 = scmp.eq.s32.totalorder %s18, 1
      %p69 = por %p67, %p68
      %p70 = scmp.ne.s32.totalorder %s59, %s60
      %p71 = scmp.eq.s32.totalorder %s18, 0
      %p72 = por %p70, %p71
      %p73 = scmp.ne.s32.totalorder %s59, %s60
      %p74 = scmp.eq.s32.totalorder %s19, 1
      %p75 = por %p73, %p74
      %p77 = scmp.ne.s32.totalorder %s60, %s76
      %p78 = scmp.eq.s32.totalorder %s19, 0
      %p79 = por %p77, %p78
      %s80 = ssub.s32 %s20, %s32
      %s81 = ssub.s32 %s21, %s28
      %s82 = sor.u32 %s80, %s81
      %p83 = scmp.eq.s32.totalorder %s82, 0
      %s85 = sadd.s32 %s84, 1
      %s86 = scalar_select %p83, %s84, %s85
      %p89 = pneg %p83
      %p90 = scmp.eq.s32.totalorder %s13, 1
      %p91 = por %p89, %p90
      %p92 = scmp.ne.s32.totalorder %s84, %s87
      %p93 = scmp.eq.s32.totalorder %s13, 0
      %p94 = por %p92, %p93
      %p95 = scmp.ne.s32.totalorder %s84, %s87
      %p96 = scmp.eq.s32.totalorder %s18, 1
      %p97 = por %p95, %p96
      %p98 = scmp.ne.s32.totalorder %s87, %s88
      %p99 = scmp.eq.s32.totalorder %s18, 0
      %p100 = por %p98, %p99
      %p101 = scmp.ne.s32.totalorder %s87, %s88
      %p102 = scmp.eq.s32.totalorder %s19, 1
      %p103 = por %p101, %p102
      %p105 = scmp.ne.s32.totalorder %s88, %s104
      %p106 = scmp.eq.s32.totalorder %s19, 0
      %p107 = por %p105, %p106
      %s108 = ssub.s32 %s20, %s32
      %s109 = ssub.s32 %s21, %s28
      %s110 = sor.u32 %s108, %s109
      %p111 = scmp.eq.s32.totalorder %s110, 0
      %s113 = sadd.s32 %s112, 1
      %s114 = scalar_select %p111, %s112, %s113
      %p117 = pneg %p111
      %p118 = scmp.eq.s32.totalorder %s13, 1
      %p119 = por %p117, %p118
      %p120 = scmp.ne.s32.totalorder %s112, %s115
      %p121 = scmp.eq.s32.totalorder %s13, 0
      %p122 = por %p120, %p121
      %p123 = scmp.ne.s32.totalorder %s112, %s115
      %p124 = scmp.eq.s32.totalorder %s18, 1
      %p125 = por %p123, %p124
      %p126 = scmp.ne.s32.totalorder %s115, %s116
      %p127 = scmp.eq.s32.totalorder %s18, 0
      %p128 = por %p126, %p127
      %p129 = scmp.ne.s32.totalorder %s115, %s116
      %p130 = scmp.eq.s32.totalorder %s19, 1
      %p131 = por %p129, %p130
      %p133 = scmp.ne.s32.totalorder %s116, %s132
      %p134 = scmp.eq.s32.totalorder %s19, 0
      %p135 = por %p133, %p134
      %p136 = scmp.le.s32.totalorder 1, %s13
      %p137 = scmp.lt.s32.totalorder %s13, 3
      %p138 = pnand %p136, %p137
      %p139 = pneg %p138
      // Predicated region
      $region9: #{tpu_custom_call.1} parent=5 // pred_check
        _
      $region10: #{tpu_custom_call.1} parent=5 // pred_check_branch
        %141 = sbr.rel (%p138) target = $region12
      $region11: #{tpu_custom_call.1} parent=5 // pred_region
        %s142 = ssub.s32 %s13, 1
        // Predicated region
        $region13: #{tpu_custom_call.1} parent=11 // pred_check
          %p143 = pneg %p46
        $region14: #{tpu_custom_call.1} parent=11 // pred_check_branch
          %145 = sbr.rel (%p143) target = $region16
        $region15: #{tpu_custom_call.1} parent=11 // pred_region
          %s147 = ssub.s32 16, 16
          %148 = vsyncadd [#allocation4], %s147
          %151 = dma.hbm_to_smem %s0, 16, [#allocation2], [#allocation4]
        $region16: #{tpu_custom_call.1} parent=11 // pred_fallthru
          _
      $region12: #{tpu_custom_call.1} parent=5 // pred_fallthru
        _
      %p152 = scmp.lt.s32.totalorder %s13, 2
      // Predicated region
      $region17: #{tpu_custom_call.1} parent=5 // pred_check
        %p153 = pneg %p152
      $region18: #{tpu_custom_call.1} parent=5 // pred_check_branch
        %155 = sbr.rel (%p153) target = $region20
      $region19: #{tpu_custom_call.1} parent=5 // pred_region
        // Predicated region
        $region21: #{tpu_custom_call.1} parent=19 // pred_check
          %p156 = pneg %p66
        $region22: #{tpu_custom_call.1} parent=19 // pred_check_branch
          %158 = sbr.rel (%p156) target = $region24
        $region23: #{tpu_custom_call.1} parent=19 // pred_region
          %p159 = scmp.lt.s32.totalorder %s20, 1
          %s160 = scalar_select %p159, %s20, 1
          %s161 = smul.addr %s160, 6
          %s162 = smul.addr %s161, 8
          %s163 = scalar_lea.vmem %s1, %s162
        $region24: #{tpu_custom_call.1} parent=19 // pred_fallthru
          _
        // Predicated region
        $region25: #{tpu_custom_call.1} parent=19 // pred_check
          %p164 = pneg %p94
        $region26: #{tpu_custom_call.1} parent=19 // pred_check_branch
          %166 = sbr.rel (%p164) target = $region28
        $region27: #{tpu_custom_call.1} parent=19 // pred_region
          %s167 = smul.u32 32, %s21
          %p168 = scmp.lt.s32.totalorder %s20, 1
          %s169 = scalar_select %p168, %s20, 1
          %p170 = scmp.lt.s32.totalorder %s167, 31
          %s171 = scalar_select %p170, %s167, 31
          %s172 = smul.addr %s169, 32
          %s173 = sadd.s32 %s171, %s172
          %s174 = smul.addr %s173, 4
          %s175 = scalar_lea.vmem %s2, %s174
          %s176 = smul.u32 32, %s21
        $region28: #{tpu_custom_call.1} parent=19 // pred_fallthru
          _
      $region20: #{tpu_custom_call.1} parent=5 // pred_fallthru
        _
      %p177 = scmp.le.s32.totalorder 1, %s13
      %p178 = scmp.lt.s32.totalorder %s13, 3
      %p179 = pnand %p177, %p178
      %p180 = pneg %p179
      // Predicated region
      $region29: #{tpu_custom_call.1} parent=5 // pred_check
        _
      $region30: #{tpu_custom_call.1} parent=5 // pred_check_branch
        %182 = sbr.rel (%p179) target = $region32
      $region31: #{tpu_custom_call.1} parent=5 // pred_region
        %s183 = ssub.s32 %s13, 1
        // Predicated region
        $region33: #{tpu_custom_call.1} parent=31 // pred_check
          %p184 = pneg %p46
        $region34: #{tpu_custom_call.1} parent=31 // pred_check_branch
          %186 = sbr.rel (%p184) target = $region36
        $region35: #{tpu_custom_call.1} parent=31 // pred_region
          %187 = dma.done [#allocation4], 16
        $region36: #{tpu_custom_call.1} parent=31 // pred_fallthru
          _
        %188 = sfence
        %p189 = pneg %p46
        %p190 = pneg %p43
        %p191 = scmp.lt.s32.totalorder %s22, 1
        %s192 = scalar_select %p191, %s22, 1
        %s193 = smul.addr %s192, 6
        %s194 = smul.addr %s193, 8
        %s195 = scalar_lea.vmem %s1, %s194
        %p196 = pneg %p72
        %p197 = pneg %p69
        %s198 = smul.u32 32, %s23
        %p199 = scmp.lt.s32.totalorder %s22, 1
        %s200 = scalar_select %p199, %s22, 1
        %p201 = scmp.lt.s32.totalorder %s198, 31
        %s202 = scalar_select %p201, %s198, 31
        %s203 = smul.addr %s200, 32
        %s204 = sadd.s32 %s202, %s203
        %s205 = smul.addr %s204, 4
        %s206 = scalar_lea.vmem %s2, %s205
        %p207 = pneg %p100
        %p208 = pneg %p97
        %p209 = pneg %p128
        %p210 = pneg %p125
        %s211 = sand.u32 %s115, 1
        %s212 = scalar_lea.sflag [#allocation3], %s211
        %s213 = sand.u32 %s115, 1
        %s214 = smul.addr %s213, 1536
        %s215 = scalar_lea.vmem [#allocation5], %s214
        %p216 = scmp.lt.s32.totalorder %s22, 1
        %s217 = scalar_select %p216, %s22, 1
        %s218 = smul.addr %s217, 6
        %s219 = smul.addr %s218, 8
        %s220 = scalar_lea.vmem %s1, %s219
        %s221 = smul.u32 32, %s23
        %p222 = scmp.lt.s32.totalorder %s22, 1
        %s223 = scalar_select %p222, %s22, 1
        %p224 = scmp.lt.s32.totalorder %s221, 31
        %s225 = scalar_select %p224, %s221, 31
        %s226 = smul.addr %s223, 32
        %s227 = sadd.s32 %s225, %s226
        %s228 = smul.addr %s227, 4
        %s229 = scalar_lea.vmem %s2, %s228
        %s230 = smul.u32 32, %s23
        %s231 = smul.u32 32, %s23
        %v232 = vld [vmem:[%s220] sm:$0xff]
        %v233 = vld [vmem:[%s220 + $0x8] sm:$0xff]
        %v234 = vld [vmem:[%s220 + $0x10] sm:$0xff]
        %v235 = vld [vmem:[%s220 + $0x18] sm:$0xff]
        %v236 = vld [vmem:[%s220 + $0x20] sm:$0xff]
        %v237 = vld [vmem:[%s220 + $0x28] sm:$0xff]
        %s238 = sld [smem:[#allocation2 + %s22]]
        %v239 = vstv %s238
        %v240 = vmul.f32 %v232, %v239
        %v241 = vmul.f32 %v233, %v239
        %v242 = vmul.f32 %v234, %v239
        %v243 = vmul.f32 %v235, %v239
        %v244 = vmul.f32 %v236, %v239
        %v245 = vmul.f32 %v237, %v239
        %v246 = vld [vmem:[%s229] sm:$0x77]
        %v247 = vld [vmem:[%s229 + $0x8] sm:$0x77]
        %v248 = vld [vmem:[%s229 + $0x10] sm:$0x77]
        %v249 = vld [vmem:[%s229 + $0x18] sm:$0x77]
        %v250 = vld [vmem:[%s229 + $0x20] sm:$0x77]
        %v251 = vld [vmem:[%s229 + $0x28] sm:$0x77]
        %v252 = vld [vmem:[%s229 + $0x30] sm:$0x77]
        %v253 = vld [vmem:[%s229 + $0x38] sm:$0x77]
        %v254 = vld [vmem:[%s229 + $0x40] sm:$0x77]
        %v255 = vld [vmem:[%s229 + $0x48] sm:$0x77]
        %v256 = vld [vmem:[%s229 + $0x50] sm:$0x77]
        %v257 = vld [vmem:[%s229 + $0x58] sm:$0x77]
        %v258 = vld [vmem:[%s229 + $0x60] sm:$0x77]
        %v259 = vld [vmem:[%s229 + $0x68] sm:$0x77]
        %v260 = vld [vmem:[%s229 + $0x70] sm:$0x77]
        %v261 = vld [vmem:[%s229 + $0x78] sm:$0x77]
        %263 = vset.pattern.permute.xlu0 0
        %264 = vperm.xlu0 %263, %v240
        %v265 = vpop.permute.xlu0 %264
        %268 = vset.pattern.permute.xlu0 0
        %269 = vperm.xlu0 %268, %v241
        %v270 = vpop.permute.xlu0 %269
        %273 = vset.pattern.permute.xlu0 0
        %274 = vperm.xlu0 %273, %v242
        %v275 = vpop.permute.xlu0 %274
        %278 = vset.pattern.permute.xlu0 0
        %279 = vperm.xlu0 %278, %v243
        %v280 = vpop.permute.xlu0 %279
        %283 = vset.pattern.permute.xlu0 0
        %284 = vperm.xlu0 %283, %v244
        %v285 = vpop.permute.xlu0 %284
        %288 = vset.pattern.permute.xlu0 0
        %289 = vperm.xlu0 %288, %v245
        %v290 = vpop.permute.xlu0 %289
        %v308 = vlaneseq
        %v309 = vshrl.u32 %v308, 7
        %v310 = vsub.s32 0, %v309
        %v311 = vrot.slane %v246, %v310
        %v312 = vlaneseq
        %v313 = vshrl.u32 %v312, 7
        %v314 = vsub.s32 4, %v313
        %v315 = vrot.slane %v246, %v314
        %v316 = vlaneseq
        %v317 = vshrl.u32 %v316, 7
        %v318 = vsub.s32 0, %v317
        %v319 = vrot.slane %v247, %v318
        %v320 = vlaneseq
        %v321 = vshrl.u32 %v320, 7
        %v322 = vsub.s32 4, %v321
        %v323 = vrot.slane %v247, %v322
        %v324 = vlaneseq
        %v325 = vshrl.u32 %v324, 7
        %v326 = vsub.s32 0, %v325
        %v327 = vrot.slane %v248, %v326
        %v328 = vlaneseq
        %v329 = vshrl.u32 %v328, 7
        %v330 = vsub.s32 4, %v329
        %v331 = vrot.slane %v248, %v330
        %v332 = vlaneseq
        %v333 = vshrl.u32 %v332, 7
        %v334 = vsub.s32 0, %v333
        %v335 = vrot.slane %v249, %v334
        %v336 = vlaneseq
        %v337 = vshrl.u32 %v336, 7
        %v338 = vsub.s32 4, %v337
        %v339 = vrot.slane %v249, %v338
        %v340 = vlaneseq
        %v341 = vshrl.u32 %v340, 7
        %v342 = vsub.s32 0, %v341
        %v343 = vrot.slane %v250, %v342
        %v344 = vlaneseq
        %v345 = vshrl.u32 %v344, 7
        %v346 = vsub.s32 4, %v345
        %v347 = vrot.slane %v250, %v346
        %v348 = vlaneseq
        %v349 = vshrl.u32 %v348, 7
        %v350 = vsub.s32 0, %v349
        %v351 = vrot.slane %v251, %v350
        %v352 = vlaneseq
        %v353 = vshrl.u32 %v352, 7
        %v354 = vsub.s32 4, %v353
        %v355 = vrot.slane %v251, %v354
        %v356 = vlaneseq
        %v357 = vshrl.u32 %v356, 7
        %v358 = vsub.s32 0, %v357
        %v359 = vrot.slane %v252, %v358
        %v360 = vlaneseq
        %v361 = vshrl.u32 %v360, 7
        %v362 = vsub.s32 4, %v361
        %v363 = vrot.slane %v252, %v362
        %v364 = vlaneseq
        %v365 = vshrl.u32 %v364, 7
        %v366 = vsub.s32 0, %v365
        %v367 = vrot.slane %v253, %v366
        %v368 = vlaneseq
        %v369 = vshrl.u32 %v368, 7
        %v370 = vsub.s32 4, %v369
        %v371 = vrot.slane %v253, %v370
        %v372 = vlaneseq
        %v373 = vshrl.u32 %v372, 7
        %v374 = vsub.s32 0, %v373
        %v375 = vrot.slane %v254, %v374
        %v376 = vlaneseq
        %v377 = vshrl.u32 %v376, 7
        %v378 = vsub.s32 4, %v377
        %v379 = vrot.slane %v254, %v378
        %v380 = vlaneseq
        %v381 = vshrl.u32 %v380, 7
        %v382 = vsub.s32 0, %v381
        %v383 = vrot.slane %v255, %v382
        %v384 = vlaneseq
        %v385 = vshrl.u32 %v384, 7
        %v386 = vsub.s32 4, %v385
        %v387 = vrot.slane %v255, %v386
        %v388 = vlaneseq
        %v389 = vshrl.u32 %v388, 7
        %v390 = vsub.s32 0, %v389
        %v391 = vrot.slane %v256, %v390
        %v392 = vlaneseq
        %v393 = vshrl.u32 %v392, 7
        %v394 = vsub.s32 4, %v393
        %v395 = vrot.slane %v256, %v394
        %v396 = vlaneseq
        %v397 = vshrl.u32 %v396, 7
        %v398 = vsub.s32 0, %v397
        %v399 = vrot.slane %v257, %v398
        %v400 = vlaneseq
        %v401 = vshrl.u32 %v400, 7
        %v402 = vsub.s32 4, %v401
        %v403 = vrot.slane %v257, %v402
        %v404 = vlaneseq
        %v405 = vshrl.u32 %v404, 7
        %v406 = vsub.s32 0, %v405
        %v407 = vrot.slane %v258, %v406
        %v408 = vlaneseq
        %v409 = vshrl.u32 %v408, 7
        %v410 = vsub.s32 4, %v409
        %v411 = vrot.slane %v258, %v410
        %v412 = vlaneseq
        %v413 = vshrl.u32 %v412, 7
        %v414 = vsub.s32 0, %v413
        %v415 = vrot.slane %v259, %v414
        %v416 = vlaneseq
        %v417 = vshrl.u32 %v416, 7
        %v418 = vsub.s32 4, %v417
        %v419 = vrot.slane %v259, %v418
        %v420 = vlaneseq
        %v421 = vshrl.u32 %v420, 7
        %v422 = vsub.s32 0, %v421
        %v423 = vrot.slane %v260, %v422
        %v424 = vlaneseq
        %v425 = vshrl.u32 %v424, 7
        %v426 = vsub.s32 4, %v425
        %v427 = vrot.slane %v260, %v426
        %v428 = vlaneseq
        %v429 = vshrl.u32 %v428, 7
        %v430 = vsub.s32 0, %v429
        %v431 = vrot.slane %v261, %v430
        %v432 = vlaneseq
        %v433 = vshrl.u32 %v432, 7
        %v434 = vsub.s32 4, %v433
        %v435 = vrot.slane %v261, %v434
        %v468 = vlaneseq
        %v469 = vshrl.u32 %v468, 7
        %v470 = vsub.s32 0, %v469
        %v471 = vrot.slane %v311, %v470
        %v472 = vlaneseq
        %v473 = vshrl.u32 %v472, 7
        %v474 = vsub.s32 0, %v473
        %v475 = vrot.slane %v315, %v474
        %v476 = vlaneseq
        %v477 = vshrl.u32 %v476, 7
        %v478 = vsub.s32 0, %v477
        %v479 = vrot.slane %v319, %v478
        %v480 = vlaneseq
        %v481 = vshrl.u32 %v480, 7
        %v482 = vsub.s32 0, %v481
        %v483 = vrot.slane %v323, %v482
        %v484 = vlaneseq
        %v485 = vshrl.u32 %v484, 7
        %v486 = vsub.s32 0, %v485
        %v487 = vrot.slane %v327, %v486
        %v488 = vlaneseq
        %v489 = vshrl.u32 %v488, 7
        %v490 = vsub.s32 0, %v489
        %v491 = vrot.slane %v331, %v490
        %v492 = vlaneseq
        %v493 = vshrl.u32 %v492, 7
        %v494 = vsub.s32 0, %v493
        %v495 = vrot.slane %v335, %v494
        %v496 = vlaneseq
        %v497 = vshrl.u32 %v496, 7
        %v498 = vsub.s32 0, %v497
        %v499 = vrot.slane %v339, %v498
        %v500 = vlaneseq
        %v501 = vshrl.u32 %v500, 7
        %v502 = vsub.s32 0, %v501
        %v503 = vrot.slane %v343, %v502
        %v504 = vlaneseq
        %v505 = vshrl.u32 %v504, 7
        %v506 = vsub.s32 0, %v505
        %v507 = vrot.slane %v347, %v506
        %v508 = vlaneseq
        %v509 = vshrl.u32 %v508, 7
        %v510 = vsub.s32 0, %v509
        %v511 = vrot.slane %v351, %v510
        %v512 = vlaneseq
        %v513 = vshrl.u32 %v512, 7
        %v514 = vsub.s32 0, %v513
        %v515 = vrot.slane %v355, %v514
        %v516 = vlaneseq
        %v517 = vshrl.u32 %v516, 7
        %v518 = vsub.s32 0, %v517
        %v519 = vrot.slane %v359, %v518
        %v520 = vlaneseq
        %v521 = vshrl.u32 %v520, 7
        %v522 = vsub.s32 0, %v521
        %v523 = vrot.slane %v363, %v522
        %v524 = vlaneseq
        %v525 = vshrl.u32 %v524, 7
        %v526 = vsub.s32 0, %v525
        %v527 = vrot.slane %v367, %v526
        %v528 = vlaneseq
        %v529 = vshrl.u32 %v528, 7
        %v530 = vsub.s32 0, %v529
        %v531 = vrot.slane %v371, %v530
        %v532 = vlaneseq
        %v533 = vshrl.u32 %v532, 7
        %v534 = vsub.s32 0, %v533
        %v535 = vrot.slane %v375, %v534
        %v536 = vlaneseq
        %v537 = vshrl.u32 %v536, 7
        %v538 = vsub.s32 0, %v537
        %v539 = vrot.slane %v379, %v538
        %v540 = vlaneseq
        %v541 = vshrl.u32 %v540, 7
        %v542 = vsub.s32 0, %v541
        %v543 = vrot.slane %v383, %v542
        %v544 = vlaneseq
        %v545 = vshrl.u32 %v544, 7
        %v546 = vsub.s32 0, %v545
        %v547 = vrot.slane %v387, %v546
        %v548 = vlaneseq
        %v549 = vshrl.u32 %v548, 7
        %v550 = vsub.s32 0, %v549
        %v551 = vrot.slane %v391, %v550
        %v552 = vlaneseq
        %v553 = vshrl.u32 %v552, 7
        %v554 = vsub.s32 0, %v553
        %v555 = vrot.slane %v395, %v554
        %v556 = vlaneseq
        %v557 = vshrl.u32 %v556, 7
        %v558 = vsub.s32 0, %v557
        %v559 = vrot.slane %v399, %v558
        %v560 = vlaneseq
        %v561 = vshrl.u32 %v560, 7
        %v562 = vsub.s32 0, %v561
        %v563 = vrot.slane %v403, %v562
        %v564 = vlaneseq
        %v565 = vshrl.u32 %v564, 7
        %v566 = vsub.s32 0, %v565
        %v567 = vrot.slane %v407, %v566
        %v568 = vlaneseq
        %v569 = vshrl.u32 %v568, 7
        %v570 = vsub.s32 0, %v569
        %v571 = vrot.slane %v411, %v570
        %v572 = vlaneseq
        %v573 = vshrl.u32 %v572, 7
        %v574 = vsub.s32 0, %v573
        %v575 = vrot.slane %v415, %v574
        %v576 = vlaneseq
        %v577 = vshrl.u32 %v576, 7
        %v578 = vsub.s32 0, %v577
        %v579 = vrot.slane %v419, %v578
        %v580 = vlaneseq
        %v581 = vshrl.u32 %v580, 7
        %v582 = vsub.s32 0, %v581
        %v583 = vrot.slane %v423, %v582
        %v584 = vlaneseq
        %v585 = vshrl.u32 %v584, 7
        %v586 = vsub.s32 0, %v585
        %v587 = vrot.slane %v427, %v586
        %v588 = vlaneseq
        %v589 = vshrl.u32 %v588, 7
        %v590 = vsub.s32 0, %v589
        %v591 = vrot.slane %v431, %v590
        %v592 = vlaneseq
        %v593 = vshrl.u32 %v592, 7
        %v594 = vsub.s32 0, %v593
        %v595 = vrot.slane %v435, %v594
        %v596 = vmul.f32 %v265, %v471
        %v597 = vmul.f32 %v265, %v475
        %v598 = vmul.f32 %v265, %v479
        %v599 = vmul.f32 %v265, %v483
        %v600 = vmul.f32 %v265, %v487
        %v601 = vmul.f32 %v265, %v491
        %v602 = vmul.f32 %v265, %v495
        %v603 = vmul.f32 %v265, %v499
        %v604 = vmul.f32 %v265, %v503
        %v605 = vmul.f32 %v265, %v507
        %v606 = vmul.f32 %v265, %v511
        %v607 = vmul.f32 %v265, %v515
        %v608 = vmul.f32 %v265, %v519
        %v609 = vmul.f32 %v265, %v523
        %v610 = vmul.f32 %v265, %v527
        %v611 = vmul.f32 %v265, %v531
        %v612 = vmul.f32 %v265, %v535
        %v613 = vmul.f32 %v265, %v539
        %v614 = vmul.f32 %v265, %v543
        %v615 = vmul.f32 %v265, %v547
        %v616 = vmul.f32 %v265, %v551
        %v617 = vmul.f32 %v265, %v555
        %v618 = vmul.f32 %v265, %v559
        %v619 = vmul.f32 %v265, %v563
        %v620 = vmul.f32 %v265, %v567
        %v621 = vmul.f32 %v265, %v571
        %v622 = vmul.f32 %v265, %v575
        %v623 = vmul.f32 %v265, %v579
        %v624 = vmul.f32 %v265, %v583
        %v625 = vmul.f32 %v265, %v587
        %v626 = vmul.f32 %v265, %v591
        %v627 = vmul.f32 %v265, %v595
        %v628 = vmul.f32 %v270, %v471
        %v629 = vmul.f32 %v270, %v475
        %v630 = vmul.f32 %v270, %v479
        %v631 = vmul.f32 %v270, %v483
        %v632 = vmul.f32 %v270, %v487
        %v633 = vmul.f32 %v270, %v491
        %v634 = vmul.f32 %v270, %v495
        %v635 = vmul.f32 %v270, %v499
        %v636 = vmul.f32 %v270, %v503
        %v637 = vmul.f32 %v270, %v507
        %v638 = vmul.f32 %v270, %v511
        %v639 = vmul.f32 %v270, %v515
        %v640 = vmul.f32 %v270, %v519
        %v641 = vmul.f32 %v270, %v523
        %v642 = vmul.f32 %v270, %v527
        %v643 = vmul.f32 %v270, %v531
        %v644 = vmul.f32 %v270, %v535
        %v645 = vmul.f32 %v270, %v539
        %v646 = vmul.f32 %v270, %v543
        %v647 = vmul.f32 %v270, %v547
        %v648 = vmul.f32 %v270, %v551
        %v649 = vmul.f32 %v270, %v555
        %v650 = vmul.f32 %v270, %v559
        %v651 = vmul.f32 %v270, %v563
        %v652 = vmul.f32 %v270, %v567
        %v653 = vmul.f32 %v270, %v571
        %v654 = vmul.f32 %v270, %v575
        %v655 = vmul.f32 %v270, %v579
        %v656 = vmul.f32 %v270, %v583
        %v657 = vmul.f32 %v270, %v587
        %v658 = vmul.f32 %v270, %v591
        %v659 = vmul.f32 %v270, %v595
        %v660 = vmul.f32 %v275, %v471
        %v661 = vmul.f32 %v275, %v475
        %v662 = vmul.f32 %v275, %v479
        %v663 = vmul.f32 %v275, %v483
        %v664 = vmul.f32 %v275, %v487
        %v665 = vmul.f32 %v275, %v491
        %v666 = vmul.f32 %v275, %v495
        %v667 = vmul.f32 %v275, %v499
        %v668 = vmul.f32 %v275, %v503
        %v669 = vmul.f32 %v275, %v507
        %v670 = vmul.f32 %v275, %v511
        %v671 = vmul.f32 %v275, %v515
        %v672 = vmul.f32 %v275, %v519
        %v673 = vmul.f32 %v275, %v523
        %v674 = vmul.f32 %v275, %v527
        %v675 = vmul.f32 %v275, %v531
        %v676 = vmul.f32 %v275, %v535
        %v677 = vmul.f32 %v275, %v539
        %v678 = vmul.f32 %v275, %v543
        %v679 = vmul.f32 %v275, %v547
        %v680 = vmul.f32 %v275, %v551
        %v681 = vmul.f32 %v275, %v555
        %v682 = vmul.f32 %v275, %v559
        %v683 = vmul.f32 %v275, %v563
        %v684 = vmul.f32 %v275, %v567
        %v685 = vmul.f32 %v275, %v571
        %v686 = vmul.f32 %v275, %v575
        %v687 = vmul.f32 %v275, %v579
        %v688 = vmul.f32 %v275, %v583
        %v689 = vmul.f32 %v275, %v587
        %v690 = vmul.f32 %v275, %v591
        %v691 = vmul.f32 %v275, %v595
        %v692 = vmul.f32 %v280, %v471
        %v693 = vmul.f32 %v280, %v475
        %v694 = vmul.f32 %v280, %v479
        %v695 = vmul.f32 %v280, %v483
        %v696 = vmul.f32 %v280, %v487
        %v697 = vmul.f32 %v280, %v491
        %v698 = vmul.f32 %v280, %v495
        %v699 = vmul.f32 %v280, %v499
        %v700 = vmul.f32 %v280, %v503
        %v701 = vmul.f32 %v280, %v507
        %v702 = vmul.f32 %v280, %v511
        %v703 = vmul.f32 %v280, %v515
        %v704 = vmul.f32 %v280, %v519
        %v705 = vmul.f32 %v280, %v523
        %v706 = vmul.f32 %v280, %v527
        %v707 = vmul.f32 %v280, %v531
        %v708 = vmul.f32 %v280, %v535
        %v709 = vmul.f32 %v280, %v539
        %v710 = vmul.f32 %v280, %v543
        %v711 = vmul.f32 %v280, %v547
        %v712 = vmul.f32 %v280, %v551
        %v713 = vmul.f32 %v280, %v555
        %v714 = vmul.f32 %v280, %v559
        %v715 = vmul.f32 %v280, %v563
        %v716 = vmul.f32 %v280, %v567
        %v717 = vmul.f32 %v280, %v571
        %v718 = vmul.f32 %v280, %v575
        %v719 = vmul.f32 %v280, %v579
        %v720 = vmul.f32 %v280, %v583
        %v721 = vmul.f32 %v280, %v587
        %v722 = vmul.f32 %v280, %v591
        %v723 = vmul.f32 %v280, %v595
        %v724 = vmul.f32 %v285, %v471
        %v725 = vmul.f32 %v285, %v475
        %v726 = vmul.f32 %v285, %v479
        %v727 = vmul.f32 %v285, %v483
        %v728 = vmul.f32 %v285, %v487
        %v729 = vmul.f32 %v285, %v491
        %v730 = vmul.f32 %v285, %v495
        %v731 = vmul.f32 %v285, %v499
        %v732 = vmul.f32 %v285, %v503
        %v733 = vmul.f32 %v285, %v507
        %v734 = vmul.f32 %v285, %v511
        %v735 = vmul.f32 %v285, %v515
        %v736 = vmul.f32 %v285, %v519
        %v737 = vmul.f32 %v285, %v523
        %v738 = vmul.f32 %v285, %v527
        %v739 = vmul.f32 %v285, %v531
        %v740 = vmul.f32 %v285, %v535
        %v741 = vmul.f32 %v285, %v539
        %v742 = vmul.f32 %v285, %v543
        %v743 = vmul.f32 %v285, %v547
        %v744 = vmul.f32 %v285, %v551
        %v745 = vmul.f32 %v285, %v555
        %v746 = vmul.f32 %v285, %v559
        %v747 = vmul.f32 %v285, %v563
        %v748 = vmul.f32 %v285, %v567
        %v749 = vmul.f32 %v285, %v571
        %v750 = vmul.f32 %v285, %v575
        %v751 = vmul.f32 %v285, %v579
        %v752 = vmul.f32 %v285, %v583
        %v753 = vmul.f32 %v285, %v587
        %v754 = vmul.f32 %v285, %v591
        %v755 = vmul.f32 %v285, %v595
        %v756 = vmul.f32 %v290, %v471
        %v757 = vmul.f32 %v290, %v475
        %v758 = vmul.f32 %v290, %v479
        %v759 = vmul.f32 %v290, %v483
        %v760 = vmul.f32 %v290, %v487
        %v761 = vmul.f32 %v290, %v491
        %v762 = vmul.f32 %v290, %v495
        %v763 = vmul.f32 %v290, %v499
        %v764 = vmul.f32 %v290, %v503
        %v765 = vmul.f32 %v290, %v507
        %v766 = vmul.f32 %v290, %v511
        %v767 = vmul.f32 %v290, %v515
        %v768 = vmul.f32 %v290, %v519
        %v769 = vmul.f32 %v290, %v523
        %v770 = vmul.f32 %v290, %v527
        %v771 = vmul.f32 %v290, %v531
        %v772 = vmul.f32 %v290, %v535
        %v773 = vmul.f32 %v290, %v539
        %v774 = vmul.f32 %v290, %v543
        %v775 = vmul.f32 %v290, %v547
        %v776 = vmul.f32 %v290, %v551
        %v777 = vmul.f32 %v290, %v555
        %v778 = vmul.f32 %v290, %v559
        %v779 = vmul.f32 %v290, %v563
        %v780 = vmul.f32 %v290, %v567
        %v781 = vmul.f32 %v290, %v571
        %v782 = vmul.f32 %v290, %v575
        %v783 = vmul.f32 %v290, %v579
        %v784 = vmul.f32 %v290, %v583
        %v785 = vmul.f32 %v290, %v587
        %v786 = vmul.f32 %v290, %v591
        %v787 = vmul.f32 %v290, %v595
        %788 = vset.pattern.permute.xlu0 1
        %789 = vperm.xlu0 %788, %v240
        %v790 = vpop.permute.xlu0 %789
        %792 = vset.pattern.permute.xlu0 1
        %793 = vperm.xlu0 %792, %v241
        %v794 = vpop.permute.xlu0 %793
        %796 = vset.pattern.permute.xlu0 1
        %797 = vperm.xlu0 %796, %v242
        %v798 = vpop.permute.xlu0 %797
        %800 = vset.pattern.permute.xlu0 1
        %801 = vperm.xlu0 %800, %v243
        %v802 = vpop.permute.xlu0 %801
        %804 = vset.pattern.permute.xlu0 1
        %805 = vperm.xlu0 %804, %v244
        %v806 = vpop.permute.xlu0 %805
        %808 = vset.pattern.permute.xlu0 1
        %809 = vperm.xlu0 %808, %v245
        %v810 = vpop.permute.xlu0 %809
        %v812 = vlaneseq
        %v813 = vshrl.u32 %v812, 7
        %v814 = vsub.s32 1, %v813
        %v815 = vrot.slane %v246, %v814
        %v816 = vlaneseq
        %v817 = vshrl.u32 %v816, 7
        %v818 = vsub.s32 5, %v817
        %v819 = vrot.slane %v246, %v818
        %v820 = vlaneseq
        %v821 = vshrl.u32 %v820, 7
        %v822 = vsub.s32 1, %v821
        %v823 = vrot.slane %v247, %v822
        %v824 = vlaneseq
        %v825 = vshrl.u32 %v824, 7
        %v826 = vsub.s32 5, %v825
        %v827 = vrot.slane %v247, %v826
        %v828 = vlaneseq
        %v829 = vshrl.u32 %v828, 7
        %v830 = vsub.s32 1, %v829
        %v831 = vrot.slane %v248, %v830
        %v832 = vlaneseq
        %v833 = vshrl.u32 %v832, 7
        %v834 = vsub.s32 5, %v833
        %v835 = vrot.slane %v248, %v834
        %v836 = vlaneseq
        %v837 = vshrl.u32 %v836, 7
        %v838 = vsub.s32 1, %v837
        %v839 = vrot.slane %v249, %v838
        %v840 = vlaneseq
        %v841 = vshrl.u32 %v840, 7
        %v842 = vsub.s32 5, %v841
        %v843 = vrot.slane %v249, %v842
        %v844 = vlaneseq
        %v845 = vshrl.u32 %v844, 7
        %v846 = vsub.s32 1, %v845
        %v847 = vrot.slane %v250, %v846
        %v848 = vlaneseq
        %v849 = vshrl.u32 %v848, 7
        %v850 = vsub.s32 5, %v849
        %v851 = vrot.slane %v250, %v850
        %v852 = vlaneseq
        %v853 = vshrl.u32 %v852, 7
        %v854 = vsub.s32 1, %v853
        %v855 = vrot.slane %v251, %v854
        %v856 = vlaneseq
        %v857 = vshrl.u32 %v856, 7
        %v858 = vsub.s32 5, %v857
        %v859 = vrot.slane %v251, %v858
        %v860 = vlaneseq
        %v861 = vshrl.u32 %v860, 7
        %v862 = vsub.s32 1, %v861
        %v863 = vrot.slane %v252, %v862
        %v864 = vlaneseq
        %v865 = vshrl.u32 %v864, 7
        %v866 = vsub.s32 5, %v865
        %v867 = vrot.slane %v252, %v866
        %v868 = vlaneseq
        %v869 = vshrl.u32 %v868, 7
        %v870 = vsub.s32 1, %v869
        %v871 = vrot.slane %v253, %v870
        %v872 = vlaneseq
        %v873 = vshrl.u32 %v872, 7
        %v874 = vsub.s32 5, %v873
        %v875 = vrot.slane %v253, %v874
        %v876 = vlaneseq
        %v877 = vshrl.u32 %v876, 7
        %v878 = vsub.s32 1, %v877
        %v879 = vrot.slane %v254, %v878
        %v880 = vlaneseq
        %v881 = vshrl.u32 %v880, 7
        %v882 = vsub.s32 5, %v881
        %v883 = vrot.slane %v254, %v882
        %v884 = vlaneseq
        %v885 = vshrl.u32 %v884, 7
        %v886 = vsub.s32 1, %v885
        %v887 = vrot.slane %v255, %v886
        %v888 = vlaneseq
        %v889 = vshrl.u32 %v888, 7
        %v890 = vsub.s32 5, %v889
        %v891 = vrot.slane %v255, %v890
        %v892 = vlaneseq
        %v893 = vshrl.u32 %v892, 7
        %v894 = vsub.s32 1, %v893
        %v895 = vrot.slane %v256, %v894
        %v896 = vlaneseq
        %v897 = vshrl.u32 %v896, 7
        %v898 = vsub.s32 5, %v897
        %v899 = vrot.slane %v256, %v898
        %v900 = vlaneseq
        %v901 = vshrl.u32 %v900, 7
        %v902 = vsub.s32 1, %v901
        %v903 = vrot.slane %v257, %v902
        %v904 = vlaneseq
        %v905 = vshrl.u32 %v904, 7
        %v906 = vsub.s32 5, %v905
        %v907 = vrot.slane %v257, %v906
        %v908 = vlaneseq
        %v909 = vshrl.u32 %v908, 7
        %v910 = vsub.s32 1, %v909
        %v911 = vrot.slane %v258, %v910
        %v912 = vlaneseq
        %v913 = vshrl.u32 %v912, 7
        %v914 = vsub.s32 5, %v913
        %v915 = vrot.slane %v258, %v914
        %v916 = vlaneseq
        %v917 = vshrl.u32 %v916, 7
        %v918 = vsub.s32 1, %v917
        %v919 = vrot.slane %v259, %v918
        %v920 = vlaneseq
        %v921 = vshrl.u32 %v920, 7
        %v922 = vsub.s32 5, %v921
        %v923 = vrot.slane %v259, %v922
        %v924 = vlaneseq
        %v925 = vshrl.u32 %v924, 7
        %v926 = vsub.s32 1, %v925
        %v927 = vrot.slane %v260, %v926
        %v928 = vlaneseq
        %v929 = vshrl.u32 %v928, 7
        %v930 = vsub.s32 5, %v929
        %v931 = vrot.slane %v260, %v930
        %v932 = vlaneseq
        %v933 = vshrl.u32 %v932, 7
        %v934 = vsub.s32 1, %v933
        %v935 = vrot.slane %v261, %v934
        %v936 = vlaneseq
        %v937 = vshrl.u32 %v936, 7
        %v938 = vsub.s32 5, %v937
        %v939 = vrot.slane %v261, %v938
        %v972 = vlaneseq
        %v973 = vshrl.u32 %v972, 7
        %v974 = vsub.s32 1, %v973
        %v975 = vrot.slane %v815, %v974
        %v976 = vlaneseq
        %v977 = vshrl.u32 %v976, 7
        %v978 = vsub.s32 1, %v977
        %v979 = vrot.slane %v819, %v978
        %v980 = vlaneseq
        %v981 = vshrl.u32 %v980, 7
        %v982 = vsub.s32 1, %v981
        %v983 = vrot.slane %v823, %v982
        %v984 = vlaneseq
        %v985 = vshrl.u32 %v984, 7
        %v986 = vsub.s32 1, %v985
        %v987 = vrot.slane %v827, %v986
        %v988 = vlaneseq
        %v989 = vshrl.u32 %v988, 7
        %v990 = vsub.s32 1, %v989
        %v991 = vrot.slane %v831, %v990
        %v992 = vlaneseq
        %v993 = vshrl.u32 %v992, 7
        %v994 = vsub.s32 1, %v993
        %v995 = vrot.slane %v835, %v994
        %v996 = vlaneseq
        %v997 = vshrl.u32 %v996, 7
        %v998 = vsub.s32 1, %v997
        %v999 = vrot.slane %v839, %v998
        %v1000 = vlaneseq
        %v1001 = vshrl.u32 %v1000, 7
        %v1002 = vsub.s32 1, %v1001
        %v1003 = vrot.slane %v843, %v1002
        %v1004 = vlaneseq
        %v1005 = vshrl.u32 %v1004, 7
        %v1006 = vsub.s32 1, %v1005
        %v1007 = vrot.slane %v847, %v1006
        %v1008 = vlaneseq
        %v1009 = vshrl.u32 %v1008, 7
        %v1010 = vsub.s32 1, %v1009
        %v1011 = vrot.slane %v851, %v1010
        %v1012 = vlaneseq
        %v1013 = vshrl.u32 %v1012, 7
        %v1014 = vsub.s32 1, %v1013
        %v1015 = vrot.slane %v855, %v1014
        %v1016 = vlaneseq
        %v1017 = vshrl.u32 %v1016, 7
        %v1018 = vsub.s32 1, %v1017
        %v1019 = vrot.slane %v859, %v1018
        %v1020 = vlaneseq
        %v1021 = vshrl.u32 %v1020, 7
        %v1022 = vsub.s32 1, %v1021
        %v1023 = vrot.slane %v863, %v1022
        %v1024 = vlaneseq
        %v1025 = vshrl.u32 %v1024, 7
        %v1026 = vsub.s32 1, %v1025
        %v1027 = vrot.slane %v867, %v1026
        %v1028 = vlaneseq
        %v1029 = vshrl.u32 %v1028, 7
        %v1030 = vsub.s32 1, %v1029
        %v1031 = vrot.slane %v871, %v1030
        %v1032 = vlaneseq
        %v1033 = vshrl.u32 %v1032, 7
        %v1034 = vsub.s32 1, %v1033
        %v1035 = vrot.slane %v875, %v1034
        %v1036 = vlaneseq
        %v1037 = vshrl.u32 %v1036, 7
        %v1038 = vsub.s32 1, %v1037
        %v1039 = vrot.slane %v879, %v1038
        %v1040 = vlaneseq
        %v1041 = vshrl.u32 %v1040, 7
        %v1042 = vsub.s32 1, %v1041
        %v1043 = vrot.slane %v883, %v1042
        %v1044 = vlaneseq
        %v1045 = vshrl.u32 %v1044, 7
        %v1046 = vsub.s32 1, %v1045
        %v1047 = vrot.slane %v887, %v1046
        %v1048 = vlaneseq
        %v1049 = vshrl.u32 %v1048, 7
        %v1050 = vsub.s32 1, %v1049
        %v1051 = vrot.slane %v891, %v1050
        %v1052 = vlaneseq
        %v1053 = vshrl.u32 %v1052, 7
        %v1054 = vsub.s32 1, %v1053
        %v1055 = vrot.slane %v895, %v1054
        %v1056 = vlaneseq
        %v1057 = vshrl.u32 %v1056, 7
        %v1058 = vsub.s32 1, %v1057
        %v1059 = vrot.slane %v899, %v1058
        %v1060 = vlaneseq
        %v1061 = vshrl.u32 %v1060, 7
        %v1062 = vsub.s32 1, %v1061
        %v1063 = vrot.slane %v903, %v1062
        %v1064 = vlaneseq
        %v1065 = vshrl.u32 %v1064, 7
        %v1066 = vsub.s32 1, %v1065
        %v1067 = vrot.slane %v907, %v1066
        %v1068 = vlaneseq
        %v1069 = vshrl.u32 %v1068, 7
        %v1070 = vsub.s32 1, %v1069
        %v1071 = vrot.slane %v911, %v1070
        %v1072 = vlaneseq
        %v1073 = vshrl.u32 %v1072, 7
        %v1074 = vsub.s32 1, %v1073
        %v1075 = vrot.slane %v915, %v1074
        %v1076 = vlaneseq
        %v1077 = vshrl.u32 %v1076, 7
        %v1078 = vsub.s32 1, %v1077
        %v1079 = vrot.slane %v919, %v1078
        %v1080 = vlaneseq
        %v1081 = vshrl.u32 %v1080, 7
        %v1082 = vsub.s32 1, %v1081
        %v1083 = vrot.slane %v923, %v1082
        %v1084 = vlaneseq
        %v1085 = vshrl.u32 %v1084, 7
        %v1086 = vsub.s32 1, %v1085
        %v1087 = vrot.slane %v927, %v1086
        %v1088 = vlaneseq
        %v1089 = vshrl.u32 %v1088, 7
        %v1090 = vsub.s32 1, %v1089
        %v1091 = vrot.slane %v931, %v1090
        %v1092 = vlaneseq
        %v1093 = vshrl.u32 %v1092, 7
        %v1094 = vsub.s32 1, %v1093
        %v1095 = vrot.slane %v935, %v1094
        %v1096 = vlaneseq
        %v1097 = vshrl.u32 %v1096, 7
        %v1098 = vsub.s32 1, %v1097
        %v1099 = vrot.slane %v939, %v1098
        %v1100 = vmul.f32 %v790, %v975
        %v1101 = vmul.f32 %v790, %v979
        %v1102 = vmul.f32 %v790, %v983
        %v1103 = vmul.f32 %v790, %v987
        %v1104 = vmul.f32 %v790, %v991
        %v1105 = vmul.f32 %v790, %v995
        %v1106 = vmul.f32 %v790, %v999
        %v1107 = vmul.f32 %v790, %v1003
        %v1108 = vmul.f32 %v790, %v1007
        %v1109 = vmul.f32 %v790, %v1011
        %v1110 = vmul.f32 %v790, %v1015
        %v1111 = vmul.f32 %v790, %v1019
        %v1112 = vmul.f32 %v790, %v1023
        %v1113 = vmul.f32 %v790, %v1027
        %v1114 = vmul.f32 %v790, %v1031
        %v1115 = vmul.f32 %v790, %v1035
        %v1116 = vmul.f32 %v790, %v1039
        %v1117 = vmul.f32 %v790, %v1043
        %v1118 = vmul.f32 %v790, %v1047
        %v1119 = vmul.f32 %v790, %v1051
        %v1120 = vmul.f32 %v790, %v1055
        %v1121 = vmul.f32 %v790, %v1059
        %v1122 = vmul.f32 %v790, %v1063
        %v1123 = vmul.f32 %v790, %v1067
        %v1124 = vmul.f32 %v790, %v1071
        %v1125 = vmul.f32 %v790, %v1075
        %v1126 = vmul.f32 %v790, %v1079
        %v1127 = vmul.f32 %v790, %v1083
        %v1128 = vmul.f32 %v790, %v1087
        %v1129 = vmul.f32 %v790, %v1091
        %v1130 = vmul.f32 %v790, %v1095
        %v1131 = vmul.f32 %v790, %v1099
        %v1132 = vmul.f32 %v794, %v975
        %v1133 = vmul.f32 %v794, %v979
        %v1134 = vmul.f32 %v794, %v983
        %v1135 = vmul.f32 %v794, %v987
        %v1136 = vmul.f32 %v794, %v991
        %v1137 = vmul.f32 %v794, %v995
        %v1138 = vmul.f32 %v794, %v999
        %v1139 = vmul.f32 %v794, %v1003
        %v1140 = vmul.f32 %v794, %v1007
        %v1141 = vmul.f32 %v794, %v1011
        %v1142 = vmul.f32 %v794, %v1015
        %v1143 = vmul.f32 %v794, %v1019
        %v1144 = vmul.f32 %v794, %v1023
        %v1145 = vmul.f32 %v794, %v1027
        %v1146 = vmul.f32 %v794, %v1031
        %v1147 = vmul.f32 %v794, %v1035
        %v1148 = vmul.f32 %v794, %v1039
        %v1149 = vmul.f32 %v794, %v1043
        %v1150 = vmul.f32 %v794, %v1047
        %v1151 = vmul.f32 %v794, %v1051
        %v1152 = vmul.f32 %v794, %v1055
        %v1153 = vmul.f32 %v794, %v1059
        %v1154 = vmul.f32 %v794, %v1063
        %v1155 = vmul.f32 %v794, %v1067
        %v1156 = vmul.f32 %v794, %v1071
        %v1157 = vmul.f32 %v794, %v1075
        %v1158 = vmul.f32 %v794, %v1079
        %v1159 = vmul.f32 %v794, %v1083
        %v1160 = vmul.f32 %v794, %v1087
        %v1161 = vmul.f32 %v794, %v1091
        %v1162 = vmul.f32 %v794, %v1095
        %v1163 = vmul.f32 %v794, %v1099
        %v1164 = vmul.f32 %v798, %v975
        %v1165 = vmul.f32 %v798, %v979
        %v1166 = vmul.f32 %v798, %v983
        %v1167 = vmul.f32 %v798, %v987
        %v1168 = vmul.f32 %v798, %v991
        %v1169 = vmul.f32 %v798, %v995
        %v1170 = vmul.f32 %v798, %v999
        %v1171 = vmul.f32 %v798, %v1003
        %v1172 = vmul.f32 %v798, %v1007
        %v1173 = vmul.f32 %v798, %v1011
        %v1174 = vmul.f32 %v798, %v1015
        %v1175 = vmul.f32 %v798, %v1019
        %v1176 = vmul.f32 %v798, %v1023
        %v1177 = vmul.f32 %v798, %v1027
        %v1178 = vmul.f32 %v798, %v1031
        %v1179 = vmul.f32 %v798, %v1035
        %v1180 = vmul.f32 %v798, %v1039
        %v1181 = vmul.f32 %v798, %v1043
        %v1182 = vmul.f32 %v798, %v1047
        %v1183 = vmul.f32 %v798, %v1051
        %v1184 = vmul.f32 %v798, %v1055
        %v1185 = vmul.f32 %v798, %v1059
        %v1186 = vmul.f32 %v798, %v1063
        %v1187 = vmul.f32 %v798, %v1067
        %v1188 = vmul.f32 %v798, %v1071
        %v1189 = vmul.f32 %v798, %v1075
        %v1190 = vmul.f32 %v798, %v1079
        %v1191 = vmul.f32 %v798, %v1083
        %v1192 = vmul.f32 %v798, %v1087
        %v1193 = vmul.f32 %v798, %v1091
        %v1194 = vmul.f32 %v798, %v1095
        %v1195 = vmul.f32 %v798, %v1099
        %v1196 = vmul.f32 %v802, %v975
        %v1197 = vmul.f32 %v802, %v979
        %v1198 = vmul.f32 %v802, %v983
        %v1199 = vmul.f32 %v802, %v987
        %v1200 = vmul.f32 %v802, %v991
        %v1201 = vmul.f32 %v802, %v995
        %v1202 = vmul.f32 %v802, %v999
        %v1203 = vmul.f32 %v802, %v1003
        %v1204 = vmul.f32 %v802, %v1007
        %v1205 = vmul.f32 %v802, %v1011
        %v1206 = vmul.f32 %v802, %v1015
        %v1207 = vmul.f32 %v802, %v1019
        %v1208 = vmul.f32 %v802, %v1023
        %v1209 = vmul.f32 %v802, %v1027
        %v1210 = vmul.f32 %v802, %v1031
        %v1211 = vmul.f32 %v802, %v1035
        %v1212 = vmul.f32 %v802, %v1039
        %v1213 = vmul.f32 %v802, %v1043
        %v1214 = vmul.f32 %v802, %v1047
        %v1215 = vmul.f32 %v802, %v1051
        %v1216 = vmul.f32 %v802, %v1055
        %v1217 = vmul.f32 %v802, %v1059
        %v1218 = vmul.f32 %v802, %v1063
        %v1219 = vmul.f32 %v802, %v1067
        %v1220 = vmul.f32 %v802, %v1071
        %v1221 = vmul.f32 %v802, %v1075
        %v1222 = vmul.f32 %v802, %v1079
        %v1223 = vmul.f32 %v802, %v1083
        %v1224 = vmul.f32 %v802, %v1087
        %v1225 = vmul.f32 %v802, %v1091
        %v1226 = vmul.f32 %v802, %v1095
        %v1227 = vmul.f32 %v802, %v1099
        %v1228 = vmul.f32 %v806, %v975
        %v1229 = vmul.f32 %v806, %v979
        %v1230 = vmul.f32 %v806, %v983
        %v1231 = vmul.f32 %v806, %v987
        %v1232 = vmul.f32 %v806, %v991
        %v1233 = vmul.f32 %v806, %v995
        %v1234 = vmul.f32 %v806, %v999
        %v1235 = vmul.f32 %v806, %v1003
        %v1236 = vmul.f32 %v806, %v1007
        %v1237 = vmul.f32 %v806, %v1011
        %v1238 = vmul.f32 %v806, %v1015
        %v1239 = vmul.f32 %v806, %v1019
        %v1240 = vmul.f32 %v806, %v1023
        %v1241 = vmul.f32 %v806, %v1027
        %v1242 = vmul.f32 %v806, %v1031
        %v1243 = vmul.f32 %v806, %v1035
        %v1244 = vmul.f32 %v806, %v1039
        %v1245 = vmul.f32 %v806, %v1043
        %v1246 = vmul.f32 %v806, %v1047
        %v1247 = vmul.f32 %v806, %v1051
        %v1248 = vmul.f32 %v806, %v1055
        %v1249 = vmul.f32 %v806, %v1059
        %v1250 = vmul.f32 %v806, %v1063
        %v1251 = vmul.f32 %v806, %v1067
        %v1252 = vmul.f32 %v806, %v1071
        %v1253 = vmul.f32 %v806, %v1075
        %v1254 = vmul.f32 %v806, %v1079
        %v1255 = vmul.f32 %v806, %v1083
        %v1256 = vmul.f32 %v806, %v1087
        %v1257 = vmul.f32 %v806, %v1091
        %v1258 = vmul.f32 %v806, %v1095
        %v1259 = vmul.f32 %v806, %v1099
        %v1260 = vmul.f32 %v810, %v975
        %v1261 = vmul.f32 %v810, %v979
        %v1262 = vmul.f32 %v810, %v983
        %v1263 = vmul.f32 %v810, %v987
        %v1264 = vmul.f32 %v810, %v991
        %v1265 = vmul.f32 %v810, %v995
        %v1266 = vmul.f32 %v810, %v999
        %v1267 = vmul.f32 %v810, %v1003
        %v1268 = vmul.f32 %v810, %v1007
        %v1269 = vmul.f32 %v810, %v1011
        %v1270 = vmul.f32 %v810, %v1015
        %v1271 = vmul.f32 %v810, %v1019
        %v1272 = vmul.f32 %v810, %v1023
        %v1273 = vmul.f32 %v810, %v1027
        %v1274 = vmul.f32 %v810, %v1031
        %v1275 = vmul.f32 %v810, %v1035
        %v1276 = vmul.f32 %v810, %v1039
        %v1277 = vmul.f32 %v810, %v1043
        %v1278 = vmul.f32 %v810, %v1047
        %v1279 = vmul.f32 %v810, %v1051
        %v1280 = vmul.f32 %v810, %v1055
        %v1281 = vmul.f32 %v810, %v1059
        %v1282 = vmul.f32 %v810, %v1063
        %v1283 = vmul.f32 %v810, %v1067
        %v1284 = vmul.f32 %v810, %v1071
        %v1285 = vmul.f32 %v810, %v1075
        %v1286 = vmul.f32 %v810, %v1079
        %v1287 = vmul.f32 %v810, %v1083
        %v1288 = vmul.f32 %v810, %v1087
        %v1289 = vmul.f32 %v810, %v1091
        %v1290 = vmul.f32 %v810, %v1095
        %v1291 = vmul.f32 %v810, %v1099
        %v1292 = vadd.f32 %v596, %v1100
        %v1293 = vadd.f32 %v597, %v1101
        %v1294 = vadd.f32 %v598, %v1102
        %v1295 = vadd.f32 %v599, %v1103
        %v1296 = vadd.f32 %v600, %v1104
        %v1297 = vadd.f32 %v601, %v1105
        %v1298 = vadd.f32 %v602, %v1106
        %v1299 = vadd.f32 %v603, %v1107
        %v1300 = vadd.f32 %v604, %v1108
        %v1301 = vadd.f32 %v605, %v1109
        %v1302 = vadd.f32 %v606, %v1110
        %v1303 = vadd.f32 %v607, %v1111
        %v1304 = vadd.f32 %v608, %v1112
        %v1305 = vadd.f32 %v609, %v1113
        %v1306 = vadd.f32 %v610, %v1114
        %v1307 = vadd.f32 %v611, %v1115
        %v1308 = vadd.f32 %v612, %v1116
        %v1309 = vadd.f32 %v613, %v1117
        %v1310 = vadd.f32 %v614, %v1118
        %v1311 = vadd.f32 %v615, %v1119
        %v1312 = vadd.f32 %v616, %v1120
        %v1313 = vadd.f32 %v617, %v1121
        %v1314 = vadd.f32 %v618, %v1122
        %v1315 = vadd.f32 %v619, %v1123
        %v1316 = vadd.f32 %v620, %v1124
        %v1317 = vadd.f32 %v621, %v1125
        %v1318 = vadd.f32 %v622, %v1126
        %v1319 = vadd.f32 %v623, %v1127
        %v1320 = vadd.f32 %v624, %v1128
        %v1321 = vadd.f32 %v625, %v1129
        %v1322 = vadd.f32 %v626, %v1130
        %v1323 = vadd.f32 %v627, %v1131
        %v1324 = vadd.f32 %v628, %v1132
        %v1325 = vadd.f32 %v629, %v1133
        %v1326 = vadd.f32 %v630, %v1134
        %v1327 = vadd.f32 %v631, %v1135
        %v1328 = vadd.f32 %v632, %v1136
        %v1329 = vadd.f32 %v633, %v1137
        %v1330 = vadd.f32 %v634, %v1138
        %v1331 = vadd.f32 %v635, %v1139
        %v1332 = vadd.f32 %v636, %v1140
        %v1333 = vadd.f32 %v637, %v1141
        %v1334 = vadd.f32 %v638, %v1142
        %v1335 = vadd.f32 %v639, %v1143
        %v1336 = vadd.f32 %v640, %v1144
        %v1337 = vadd.f32 %v641, %v1145
        %v1338 = vadd.f32 %v642, %v1146
        %v1339 = vadd.f32 %v643, %v1147
        %v1340 = vadd.f32 %v644, %v1148
        %v1341 = vadd.f32 %v645, %v1149
        %v1342 = vadd.f32 %v646, %v1150
        %v1343 = vadd.f32 %v647, %v1151
        %v1344 = vadd.f32 %v648, %v1152
        %v1345 = vadd.f32 %v649, %v1153
        %v1346 = vadd.f32 %v650, %v1154
        %v1347 = vadd.f32 %v651, %v1155
        %v1348 = vadd.f32 %v652, %v1156
        %v1349 = vadd.f32 %v653, %v1157
        %v1350 = vadd.f32 %v654, %v1158
        %v1351 = vadd.f32 %v655, %v1159
        %v1352 = vadd.f32 %v656, %v1160
        %v1353 = vadd.f32 %v657, %v1161
        %v1354 = vadd.f32 %v658, %v1162
        %v1355 = vadd.f32 %v659, %v1163
        %v1356 = vadd.f32 %v660, %v1164
        %v1357 = vadd.f32 %v661, %v1165
        %v1358 = vadd.f32 %v662, %v1166
        %v1359 = vadd.f32 %v663, %v1167
        %v1360 = vadd.f32 %v664, %v1168
        %v1361 = vadd.f32 %v665, %v1169
        %v1362 = vadd.f32 %v666, %v1170
        %v1363 = vadd.f32 %v667, %v1171
        %v1364 = vadd.f32 %v668, %v1172
        %v1365 = vadd.f32 %v669, %v1173
        %v1366 = vadd.f32 %v670, %v1174
        %v1367 = vadd.f32 %v671, %v1175
        %v1368 = vadd.f32 %v672, %v1176
        %v1369 = vadd.f32 %v673, %v1177
        %v1370 = vadd.f32 %v674, %v1178
        %v1371 = vadd.f32 %v675, %v1179
        %v1372 = vadd.f32 %v676, %v1180
        %v1373 = vadd.f32 %v677, %v1181
        %v1374 = vadd.f32 %v678, %v1182
        %v1375 = vadd.f32 %v679, %v1183
        %v1376 = vadd.f32 %v680, %v1184
        %v1377 = vadd.f32 %v681, %v1185
        %v1378 = vadd.f32 %v682, %v1186
        %v1379 = vadd.f32 %v683, %v1187
        %v1380 = vadd.f32 %v684, %v1188
        %v1381 = vadd.f32 %v685, %v1189
        %v1382 = vadd.f32 %v686, %v1190
        %v1383 = vadd.f32 %v687, %v1191
        %v1384 = vadd.f32 %v688, %v1192
        %v1385 = vadd.f32 %v689, %v1193
        %v1386 = vadd.f32 %v690, %v1194
        %v1387 = vadd.f32 %v691, %v1195
        %v1388 = vadd.f32 %v692, %v1196
        %v1389 = vadd.f32 %v693, %v1197
        %v1390 = vadd.f32 %v694, %v1198
        %v1391 = vadd.f32 %v695, %v1199
        %v1392 = vadd.f32 %v696, %v1200
        %v1393 = vadd.f32 %v697, %v1201
        %v1394 = vadd.f32 %v698, %v1202
        %v1395 = vadd.f32 %v699, %v1203
        %v1396 = vadd.f32 %v700, %v1204
        %v1397 = vadd.f32 %v701, %v1205
        %v1398 = vadd.f32 %v702, %v1206
        %v1399 = vadd.f32 %v703, %v1207
        %v1400 = vadd.f32 %v704, %v1208
        %v1401 = vadd.f32 %v705, %v1209
        %v1402 = vadd.f32 %v706, %v1210
        %v1403 = vadd.f32 %v707, %v1211
        %v1404 = vadd.f32 %v708, %v1212
        %v1405 = vadd.f32 %v709, %v1213
        %v1406 = vadd.f32 %v710, %v1214
        %v1407 = vadd.f32 %v711, %v1215
        %v1408 = vadd.f32 %v712, %v1216
        %v1409 = vadd.f32 %v713, %v1217
        %v1410 = vadd.f32 %v714, %v1218
        %v1411 = vadd.f32 %v715, %v1219
        %v1412 = vadd.f32 %v716, %v1220
        %v1413 = vadd.f32 %v717, %v1221
        %v1414 = vadd.f32 %v718, %v1222
        %v1415 = vadd.f32 %v719, %v1223
        %v1416 = vadd.f32 %v720, %v1224
        %v1417 = vadd.f32 %v721, %v1225
        %v1418 = vadd.f32 %v722, %v1226
        %v1419 = vadd.f32 %v723, %v1227
        %v1420 = vadd.f32 %v724, %v1228
        %v1421 = vadd.f32 %v725, %v1229
        %v1422 = vadd.f32 %v726, %v1230
        %v1423 = vadd.f32 %v727, %v1231
        %v1424 = vadd.f32 %v728, %v1232
        %v1425 = vadd.f32 %v729, %v1233
        %v1426 = vadd.f32 %v730, %v1234
        %v1427 = vadd.f32 %v731, %v1235
        %v1428 = vadd.f32 %v732, %v1236
        %v1429 = vadd.f32 %v733, %v1237
        %v1430 = vadd.f32 %v734, %v1238
        %v1431 = vadd.f32 %v735, %v1239
        %v1432 = vadd.f32 %v736, %v1240
        %v1433 = vadd.f32 %v737, %v1241
        %v1434 = vadd.f32 %v738, %v1242
        %v1435 = vadd.f32 %v739, %v1243
        %v1436 = vadd.f32 %v740, %v1244
        %v1437 = vadd.f32 %v741, %v1245
        %v1438 = vadd.f32 %v742, %v1246
        %v1439 = vadd.f32 %v743, %v1247
        %v1440 = vadd.f32 %v744, %v1248
        %v1441 = vadd.f32 %v745, %v1249
        %v1442 = vadd.f32 %v746, %v1250
        %v1443 = vadd.f32 %v747, %v1251
        %v1444 = vadd.f32 %v748, %v1252
        %v1445 = vadd.f32 %v749, %v1253
        %v1446 = vadd.f32 %v750, %v1254
        %v1447 = vadd.f32 %v751, %v1255
        %v1448 = vadd.f32 %v752, %v1256
        %v1449 = vadd.f32 %v753, %v1257
        %v1450 = vadd.f32 %v754, %v1258
        %v1451 = vadd.f32 %v755, %v1259
        %v1452 = vadd.f32 %v756, %v1260
        %v1453 = vadd.f32 %v757, %v1261
        %v1454 = vadd.f32 %v758, %v1262
        %v1455 = vadd.f32 %v759, %v1263
        %v1456 = vadd.f32 %v760, %v1264
        %v1457 = vadd.f32 %v761, %v1265
        %v1458 = vadd.f32 %v762, %v1266
        %v1459 = vadd.f32 %v763, %v1267
        %v1460 = vadd.f32 %v764, %v1268
        %v1461 = vadd.f32 %v765, %v1269
        %v1462 = vadd.f32 %v766, %v1270
        %v1463 = vadd.f32 %v767, %v1271
        %v1464 = vadd.f32 %v768, %v1272
        %v1465 = vadd.f32 %v769, %v1273
        %v1466 = vadd.f32 %v770, %v1274
        %v1467 = vadd.f32 %v771, %v1275
        %v1468 = vadd.f32 %v772, %v1276
        %v1469 = vadd.f32 %v773, %v1277
        %v1470 = vadd.f32 %v774, %v1278
        %v1471 = vadd.f32 %v775, %v1279
        %v1472 = vadd.f32 %v776, %v1280
        %v1473 = vadd.f32 %v777, %v1281
        %v1474 = vadd.f32 %v778, %v1282
        %v1475 = vadd.f32 %v779, %v1283
        %v1476 = vadd.f32 %v780, %v1284
        %v1477 = vadd.f32 %v781, %v1285
        %v1478 = vadd.f32 %v782, %v1286
        %v1479 = vadd.f32 %v783, %v1287
        %v1480 = vadd.f32 %v784, %v1288
        %v1481 = vadd.f32 %v785, %v1289
        %v1482 = vadd.f32 %v786, %v1290
        %v1483 = vadd.f32 %v787, %v1291
        %1484 = vset.pattern.permute.xlu0 2
        %1485 = vperm.xlu0 %1484, %v240
        %v1486 = vpop.permute.xlu0 %1485
        %1488 = vset.pattern.permute.xlu0 2
        %1489 = vperm.xlu0 %1488, %v241
        %v1490 = vpop.permute.xlu0 %1489
        %1492 = vset.pattern.permute.xlu0 2
        %1493 = vperm.xlu0 %1492, %v242
        %v1494 = vpop.permute.xlu0 %1493
        %1496 = vset.pattern.permute.xlu0 2
        %1497 = vperm.xlu0 %1496, %v243
        %v1498 = vpop.permute.xlu0 %1497
        %1500 = vset.pattern.permute.xlu0 2
        %1501 = vperm.xlu0 %1500, %v244
        %v1502 = vpop.permute.xlu0 %1501
        %1504 = vset.pattern.permute.xlu0 2
        %1505 = vperm.xlu0 %1504, %v245
        %v1506 = vpop.permute.xlu0 %1505
        %v1508 = vlaneseq
        %v1509 = vshrl.u32 %v1508, 7
        %v1510 = vsub.s32 2, %v1509
        %v1511 = vrot.slane %v246, %v1510
        %v1512 = vlaneseq
        %v1513 = vshrl.u32 %v1512, 7
        %v1514 = vsub.s32 6, %v1513
        %v1515 = vrot.slane %v246, %v1514
        %v1516 = vlaneseq
        %v1517 = vshrl.u32 %v1516, 7
        %v1518 = vsub.s32 2, %v1517
        %v1519 = vrot.slane %v247, %v1518
        %v1520 = vlaneseq
        %v1521 = vshrl.u32 %v1520, 7
        %v1522 = vsub.s32 6, %v1521
        %v1523 = vrot.slane %v247, %v1522
        %v1524 = vlaneseq
        %v1525 = vshrl.u32 %v1524, 7
        %v1526 = vsub.s32 2, %v1525
        %v1527 = vrot.slane %v248, %v1526
        %v1528 = vlaneseq
        %v1529 = vshrl.u32 %v1528, 7
        %v1530 = vsub.s32 6, %v1529
        %v1531 = vrot.slane %v248, %v1530
        %v1532 = vlaneseq
        %v1533 = vshrl.u32 %v1532, 7
        %v1534 = vsub.s32 2, %v1533
        %v1535 = vrot.slane %v249, %v1534
        %v1536 = vlaneseq
        %v1537 = vshrl.u32 %v1536, 7
        %v1538 = vsub.s32 6, %v1537
        %v1539 = vrot.slane %v249, %v1538
        %v1540 = vlaneseq
        %v1541 = vshrl.u32 %v1540, 7
        %v1542 = vsub.s32 2, %v1541
        %v1543 = vrot.slane %v250, %v1542
        %v1544 = vlaneseq
        %v1545 = vshrl.u32 %v1544, 7
        %v1546 = vsub.s32 6, %v1545
        %v1547 = vrot.slane %v250, %v1546
        %v1548 = vlaneseq
        %v1549 = vshrl.u32 %v1548, 7
        %v1550 = vsub.s32 2, %v1549
        %v1551 = vrot.slane %v251, %v1550
        %v1552 = vlaneseq
        %v1553 = vshrl.u32 %v1552, 7
        %v1554 = vsub.s32 6, %v1553
        %v1555 = vrot.slane %v251, %v1554
        %v1556 = vlaneseq
        %v1557 = vshrl.u32 %v1556, 7
        %v1558 = vsub.s32 2, %v1557
        %v1559 = vrot.slane %v252, %v1558
        %v1560 = vlaneseq
        %v1561 = vshrl.u32 %v1560, 7
        %v1562 = vsub.s32 6, %v1561
        %v1563 = vrot.slane %v252, %v1562
        %v1564 = vlaneseq
        %v1565 = vshrl.u32 %v1564, 7
        %v1566 = vsub.s32 2, %v1565
        %v1567 = vrot.slane %v253, %v1566
        %v1568 = vlaneseq
        %v1569 = vshrl.u32 %v1568, 7
        %v1570 = vsub.s32 6, %v1569
        %v1571 = vrot.slane %v253, %v1570
        %v1572 = vlaneseq
        %v1573 = vshrl.u32 %v1572, 7
        %v1574 = vsub.s32 2, %v1573
        %v1575 = vrot.slane %v254, %v1574
        %v1576 = vlaneseq
        %v1577 = vshrl.u32 %v1576, 7
        %v1578 = vsub.s32 6, %v1577
        %v1579 = vrot.slane %v254, %v1578
        %v1580 = vlaneseq
        %v1581 = vshrl.u32 %v1580, 7
        %v1582 = vsub.s32 2, %v1581
        %v1583 = vrot.slane %v255, %v1582
        %v1584 = vlaneseq
        %v1585 = vshrl.u32 %v1584, 7
        %v1586 = vsub.s32 6, %v1585
        %v1587 = vrot.slane %v255, %v1586
        %v1588 = vlaneseq
        %v1589 = vshrl.u32 %v1588, 7
        %v1590 = vsub.s32 2, %v1589
        %v1591 = vrot.slane %v256, %v1590
        %v1592 = vlaneseq
        %v1593 = vshrl.u32 %v1592, 7
        %v1594 = vsub.s32 6, %v1593
        %v1595 = vrot.slane %v256, %v1594
        %v1596 = vlaneseq
        %v1597 = vshrl.u32 %v1596, 7
        %v1598 = vsub.s32 2, %v1597
        %v1599 = vrot.slane %v257, %v1598
        %v1600 = vlaneseq
        %v1601 = vshrl.u32 %v1600, 7
        %v1602 = vsub.s32 6, %v1601
        %v1603 = vrot.slane %v257, %v1602
        %v1604 = vlaneseq
        %v1605 = vshrl.u32 %v1604, 7
        %v1606 = vsub.s32 2, %v1605
        %v1607 = vrot.slane %v258, %v1606
        %v1608 = vlaneseq
        %v1609 = vshrl.u32 %v1608, 7
        %v1610 = vsub.s32 6, %v1609
        %v1611 = vrot.slane %v258, %v1610
        %v1612 = vlaneseq
        %v1613 = vshrl.u32 %v1612, 7
        %v1614 = vsub.s32 2, %v1613
        %v1615 = vrot.slane %v259, %v1614
        %v1616 = vlaneseq
        %v1617 = vshrl.u32 %v1616, 7
        %v1618 = vsub.s32 6, %v1617
        %v1619 = vrot.slane %v259, %v1618
        %v1620 = vlaneseq
        %v1621 = vshrl.u32 %v1620, 7
        %v1622 = vsub.s32 2, %v1621
        %v1623 = vrot.slane %v260, %v1622
        %v1624 = vlaneseq
        %v1625 = vshrl.u32 %v1624, 7
        %v1626 = vsub.s32 6, %v1625
        %v1627 = vrot.slane %v260, %v1626
        %v1628 = vlaneseq
        %v1629 = vshrl.u32 %v1628, 7
        %v1630 = vsub.s32 2, %v1629
        %v1631 = vrot.slane %v261, %v1630
        %v1632 = vlaneseq
        %v1633 = vshrl.u32 %v1632, 7
        %v1634 = vsub.s32 6, %v1633
        %v1635 = vrot.slane %v261, %v1634
        %v1668 = vlaneseq
        %v1669 = vshrl.u32 %v1668, 7
        %v1670 = vsub.s32 2, %v1669
        %v1671 = vrot.slane %v1511, %v1670
        %v1672 = vlaneseq
        %v1673 = vshrl.u32 %v1672, 7
        %v1674 = vsub.s32 2, %v1673
        %v1675 = vrot.slane %v1515, %v1674
        %v1676 = vlaneseq
        %v1677 = vshrl.u32 %v1676, 7
        %v1678 = vsub.s32 2, %v1677
        %v1679 = vrot.slane %v1519, %v1678
        %v1680 = vlaneseq
        %v1681 = vshrl.u32 %v1680, 7
        %v1682 = vsub.s32 2, %v1681
        %v1683 = vrot.slane %v1523, %v1682
        %v1684 = vlaneseq
        %v1685 = vshrl.u32 %v1684, 7
        %v1686 = vsub.s32 2, %v1685
        %v1687 = vrot.slane %v1527, %v1686
        %v1688 = vlaneseq
        %v1689 = vshrl.u32 %v1688, 7
        %v1690 = vsub.s32 2, %v1689
        %v1691 = vrot.slane %v1531, %v1690
        %v1692 = vlaneseq
        %v1693 = vshrl.u32 %v1692, 7
        %v1694 = vsub.s32 2, %v1693
        %v1695 = vrot.slane %v1535, %v1694
        %v1696 = vlaneseq
        %v1697 = vshrl.u32 %v1696, 7
        %v1698 = vsub.s32 2, %v1697
        %v1699 = vrot.slane %v1539, %v1698
        %v1700 = vlaneseq
        %v1701 = vshrl.u32 %v1700, 7
        %v1702 = vsub.s32 2, %v1701
        %v1703 = vrot.slane %v1543, %v1702
        %v1704 = vlaneseq
        %v1705 = vshrl.u32 %v1704, 7
        %v1706 = vsub.s32 2, %v1705
        %v1707 = vrot.slane %v1547, %v1706
        %v1708 = vlaneseq
        %v1709 = vshrl.u32 %v1708, 7
        %v1710 = vsub.s32 2, %v1709
        %v1711 = vrot.slane %v1551, %v1710
        %v1712 = vlaneseq
        %v1713 = vshrl.u32 %v1712, 7
        %v1714 = vsub.s32 2, %v1713
        %v1715 = vrot.slane %v1555, %v1714
        %v1716 = vlaneseq
        %v1717 = vshrl.u32 %v1716, 7
        %v1718 = vsub.s32 2, %v1717
        %v1719 = vrot.slane %v1559, %v1718
        %v1720 = vlaneseq
        %v1721 = vshrl.u32 %v1720, 7
        %v1722 = vsub.s32 2, %v1721
        %v1723 = vrot.slane %v1563, %v1722
        %v1724 = vlaneseq
        %v1725 = vshrl.u32 %v1724, 7
        %v1726 = vsub.s32 2, %v1725
        %v1727 = vrot.slane %v1567, %v1726
        %v1728 = vlaneseq
        %v1729 = vshrl.u32 %v1728, 7
        %v1730 = vsub.s32 2, %v1729
        %v1731 = vrot.slane %v1571, %v1730
        %v1732 = vlaneseq
        %v1733 = vshrl.u32 %v1732, 7
        %v1734 = vsub.s32 2, %v1733
        %v1735 = vrot.slane %v1575, %v1734
        %v1736 = vlaneseq
        %v1737 = vshrl.u32 %v1736, 7
        %v1738 = vsub.s32 2, %v1737
        %v1739 = vrot.slane %v1579, %v1738
        %v1740 = vlaneseq
        %v1741 = vshrl.u32 %v1740, 7
        %v1742 = vsub.s32 2, %v1741
        %v1743 = vrot.slane %v1583, %v1742
        %v1744 = vlaneseq
        %v1745 = vshrl.u32 %v1744, 7
        %v1746 = vsub.s32 2, %v1745
        %v1747 = vrot.slane %v1587, %v1746
        %v1748 = vlaneseq
        %v1749 = vshrl.u32 %v1748, 7
        %v1750 = vsub.s32 2, %v1749
        %v1751 = vrot.slane %v1591, %v1750
        %v1752 = vlaneseq
        %v1753 = vshrl.u32 %v1752, 7
        %v1754 = vsub.s32 2, %v1753
        %v1755 = vrot.slane %v1595, %v1754
        %v1756 = vlaneseq
        %v1757 = vshrl.u32 %v1756, 7
        %v1758 = vsub.s32 2, %v1757
        %v1759 = vrot.slane %v1599, %v1758
        %v1760 = vlaneseq
        %v1761 = vshrl.u32 %v1760, 7
        %v1762 = vsub.s32 2, %v1761
        %v1763 = vrot.slane %v1603, %v1762
        %v1764 = vlaneseq
        %v1765 = vshrl.u32 %v1764, 7
        %v1766 = vsub.s32 2, %v1765
        %v1767 = vrot.slane %v1607, %v1766
        %v1768 = vlaneseq
        %v1769 = vshrl.u32 %v1768, 7
        %v1770 = vsub.s32 2, %v1769
        %v1771 = vrot.slane %v1611, %v1770
        %v1772 = vlaneseq
        %v1773 = vshrl.u32 %v1772, 7
        %v1774 = vsub.s32 2, %v1773
        %v1775 = vrot.slane %v1615, %v1774
        %v1776 = vlaneseq
        %v1777 = vshrl.u32 %v1776, 7
        %v1778 = vsub.s32 2, %v1777
        %v1779 = vrot.slane %v1619, %v1778
        %v1780 = vlaneseq
        %v1781 = vshrl.u32 %v1780, 7
        %v1782 = vsub.s32 2, %v1781
        %v1783 = vrot.slane %v1623, %v1782
        %v1784 = vlaneseq
        %v1785 = vshrl.u32 %v1784, 7
        %v1786 = vsub.s32 2, %v1785
        %v1787 = vrot.slane %v1627, %v1786
        %v1788 = vlaneseq
        %v1789 = vshrl.u32 %v1788, 7
        %v1790 = vsub.s32 2, %v1789
        %v1791 = vrot.slane %v1631, %v1790
        %v1792 = vlaneseq
        %v1793 = vshrl.u32 %v1792, 7
        %v1794 = vsub.s32 2, %v1793
        %v1795 = vrot.slane %v1635, %v1794
        %v1796 = vmul.f32 %v1486, %v1671
        %v1797 = vmul.f32 %v1486, %v1675
        %v1798 = vmul.f32 %v1486, %v1679
        %v1799 = vmul.f32 %v1486, %v1683
        %v1800 = vmul.f32 %v1486, %v1687
        %v1801 = vmul.f32 %v1486, %v1691
        %v1802 = vmul.f32 %v1486, %v1695
        %v1803 = vmul.f32 %v1486, %v1699
        %v1804 = vmul.f32 %v1486, %v1703
        %v1805 = vmul.f32 %v1486, %v1707
        %v1806 = vmul.f32 %v1486, %v1711
        %v1807 = vmul.f32 %v1486, %v1715
        %v1808 = vmul.f32 %v1486, %v1719
        %v1809 = vmul.f32 %v1486, %v1723
        %v1810 = vmul.f32 %v1486, %v1727
        %v1811 = vmul.f32 %v1486, %v1731
        %v1812 = vmul.f32 %v1486, %v1735
        %v1813 = vmul.f32 %v1486, %v1739
        %v1814 = vmul.f32 %v1486, %v1743
        %v1815 = vmul.f32 %v1486, %v1747
        %v1816 = vmul.f32 %v1486, %v1751
        %v1817 = vmul.f32 %v1486, %v1755
        %v1818 = vmul.f32 %v1486, %v1759
        %v1819 = vmul.f32 %v1486, %v1763
        %v1820 = vmul.f32 %v1486, %v1767
        %v1821 = vmul.f32 %v1486, %v1771
        %v1822 = vmul.f32 %v1486, %v1775
        %v1823 = vmul.f32 %v1486, %v1779
        %v1824 = vmul.f32 %v1486, %v1783
        %v1825 = vmul.f32 %v1486, %v1787
        %v1826 = vmul.f32 %v1486, %v1791
        %v1827 = vmul.f32 %v1486, %v1795
        %v1828 = vmul.f32 %v1490, %v1671
        %v1829 = vmul.f32 %v1490, %v1675
        %v1830 = vmul.f32 %v1490, %v1679
        %v1831 = vmul.f32 %v1490, %v1683
        %v1832 = vmul.f32 %v1490, %v1687
        %v1833 = vmul.f32 %v1490, %v1691
        %v1834 = vmul.f32 %v1490, %v1695
        %v1835 = vmul.f32 %v1490, %v1699
        %v1836 = vmul.f32 %v1490, %v1703
        %v1837 = vmul.f32 %v1490, %v1707
        %v1838 = vmul.f32 %v1490, %v1711
        %v1839 = vmul.f32 %v1490, %v1715
        %v1840 = vmul.f32 %v1490, %v1719
        %v1841 = vmul.f32 %v1490, %v1723
        %v1842 = vmul.f32 %v1490, %v1727
        %v1843 = vmul.f32 %v1490, %v1731
        %v1844 = vmul.f32 %v1490, %v1735
        %v1845 = vmul.f32 %v1490, %v1739
        %v1846 = vmul.f32 %v1490, %v1743
        %v1847 = vmul.f32 %v1490, %v1747
        %v1848 = vmul.f32 %v1490, %v1751
        %v1849 = vmul.f32 %v1490, %v1755
        %v1850 = vmul.f32 %v1490, %v1759
        %v1851 = vmul.f32 %v1490, %v1763
        %v1852 = vmul.f32 %v1490, %v1767
        %v1853 = vmul.f32 %v1490, %v1771
        %v1854 = vmul.f32 %v1490, %v1775
        %v1855 = vmul.f32 %v1490, %v1779
        %v1856 = vmul.f32 %v1490, %v1783
        %v1857 = vmul.f32 %v1490, %v1787
        %v1858 = vmul.f32 %v1490, %v1791
        %v1859 = vmul.f32 %v1490, %v1795
        %v1860 = vmul.f32 %v1494, %v1671
        %v1861 = vmul.f32 %v1494, %v1675
        %v1862 = vmul.f32 %v1494, %v1679
        %v1863 = vmul.f32 %v1494, %v1683
        %v1864 = vmul.f32 %v1494, %v1687
        %v1865 = vmul.f32 %v1494, %v1691
        %v1866 = vmul.f32 %v1494, %v1695
        %v1867 = vmul.f32 %v1494, %v1699
        %v1868 = vmul.f32 %v1494, %v1703
        %v1869 = vmul.f32 %v1494, %v1707
        %v1870 = vmul.f32 %v1494, %v1711
        %v1871 = vmul.f32 %v1494, %v1715
        %v1872 = vmul.f32 %v1494, %v1719
        %v1873 = vmul.f32 %v1494, %v1723
        %v1874 = vmul.f32 %v1494, %v1727
        %v1875 = vmul.f32 %v1494, %v1731
        %v1876 = vmul.f32 %v1494, %v1735
        %v1877 = vmul.f32 %v1494, %v1739
        %v1878 = vmul.f32 %v1494, %v1743
        %v1879 = vmul.f32 %v1494, %v1747
        %v1880 = vmul.f32 %v1494, %v1751
        %v1881 = vmul.f32 %v1494, %v1755
        %v1882 = vmul.f32 %v1494, %v1759
        %v1883 = vmul.f32 %v1494, %v1763
        %v1884 = vmul.f32 %v1494, %v1767
        %v1885 = vmul.f32 %v1494, %v1771
        %v1886 = vmul.f32 %v1494, %v1775
        %v1887 = vmul.f32 %v1494, %v1779
        %v1888 = vmul.f32 %v1494, %v1783
        %v1889 = vmul.f32 %v1494, %v1787
        %v1890 = vmul.f32 %v1494, %v1791
        %v1891 = vmul.f32 %v1494, %v1795
        %v1892 = vmul.f32 %v1498, %v1671
        %v1893 = vmul.f32 %v1498, %v1675
        %v1894 = vmul.f32 %v1498, %v1679
        %v1895 = vmul.f32 %v1498, %v1683
        %v1896 = vmul.f32 %v1498, %v1687
        %v1897 = vmul.f32 %v1498, %v1691
        %v1898 = vmul.f32 %v1498, %v1695
        %v1899 = vmul.f32 %v1498, %v1699
        %v1900 = vmul.f32 %v1498, %v1703
        %v1901 = vmul.f32 %v1498, %v1707
        %v1902 = vmul.f32 %v1498, %v1711
        %v1903 = vmul.f32 %v1498, %v1715
        %v1904 = vmul.f32 %v1498, %v1719
        %v1905 = vmul.f32 %v1498, %v1723
        %v1906 = vmul.f32 %v1498, %v1727
        %v1907 = vmul.f32 %v1498, %v1731
        %v1908 = vmul.f32 %v1498, %v1735
        %v1909 = vmul.f32 %v1498, %v1739
        %v1910 = vmul.f32 %v1498, %v1743
        %v1911 = vmul.f32 %v1498, %v1747
        %v1912 = vmul.f32 %v1498, %v1751
        %v1913 = vmul.f32 %v1498, %v1755
        %v1914 = vmul.f32 %v1498, %v1759
        %v1915 = vmul.f32 %v1498, %v1763
        %v1916 = vmul.f32 %v1498, %v1767
        %v1917 = vmul.f32 %v1498, %v1771
        %v1918 = vmul.f32 %v1498, %v1775
        %v1919 = vmul.f32 %v1498, %v1779
        %v1920 = vmul.f32 %v1498, %v1783
        %v1921 = vmul.f32 %v1498, %v1787
        %v1922 = vmul.f32 %v1498, %v1791
        %v1923 = vmul.f32 %v1498, %v1795
        %v1924 = vmul.f32 %v1502, %v1671
        %v1925 = vmul.f32 %v1502, %v1675
        %v1926 = vmul.f32 %v1502, %v1679
        %v1927 = vmul.f32 %v1502, %v1683
        %v1928 = vmul.f32 %v1502, %v1687
        %v1929 = vmul.f32 %v1502, %v1691
        %v1930 = vmul.f32 %v1502, %v1695
        %v1931 = vmul.f32 %v1502, %v1699
        %v1932 = vmul.f32 %v1502, %v1703
        %v1933 = vmul.f32 %v1502, %v1707
        %v1934 = vmul.f32 %v1502, %v1711
        %v1935 = vmul.f32 %v1502, %v1715
        %v1936 = vmul.f32 %v1502, %v1719
        %v1937 = vmul.f32 %v1502, %v1723
        %v1938 = vmul.f32 %v1502, %v1727
        %v1939 = vmul.f32 %v1502, %v1731
        %v1940 = vmul.f32 %v1502, %v1735
        %v1941 = vmul.f32 %v1502, %v1739
        %v1942 = vmul.f32 %v1502, %v1743
        %v1943 = vmul.f32 %v1502, %v1747
        %v1944 = vmul.f32 %v1502, %v1751
        %v1945 = vmul.f32 %v1502, %v1755
        %v1946 = vmul.f32 %v1502, %v1759
        %v1947 = vmul.f32 %v1502, %v1763
        %v1948 = vmul.f32 %v1502, %v1767
        %v1949 = vmul.f32 %v1502, %v1771
        %v1950 = vmul.f32 %v1502, %v1775
        %v1951 = vmul.f32 %v1502, %v1779
        %v1952 = vmul.f32 %v1502, %v1783
        %v1953 = vmul.f32 %v1502, %v1787
        %v1954 = vmul.f32 %v1502, %v1791
        %v1955 = vmul.f32 %v1502, %v1795
        %v1956 = vmul.f32 %v1506, %v1671
        %v1957 = vmul.f32 %v1506, %v1675
        %v1958 = vmul.f32 %v1506, %v1679
        %v1959 = vmul.f32 %v1506, %v1683
        %v1960 = vmul.f32 %v1506, %v1687
        %v1961 = vmul.f32 %v1506, %v1691
        %v1962 = vmul.f32 %v1506, %v1695
        %v1963 = vmul.f32 %v1506, %v1699
        %v1964 = vmul.f32 %v1506, %v1703
        %v1965 = vmul.f32 %v1506, %v1707
        %v1966 = vmul.f32 %v1506, %v1711
        %v1967 = vmul.f32 %v1506, %v1715
        %v1968 = vmul.f32 %v1506, %v1719
        %v1969 = vmul.f32 %v1506, %v1723
        %v1970 = vmul.f32 %v1506, %v1727
        %v1971 = vmul.f32 %v1506, %v1731
        %v1972 = vmul.f32 %v1506, %v1735
        %v1973 = vmul.f32 %v1506, %v1739
        %v1974 = vmul.f32 %v1506, %v1743
        %v1975 = vmul.f32 %v1506, %v1747
        %v1976 = vmul.f32 %v1506, %v1751
        %v1977 = vmul.f32 %v1506, %v1755
        %v1978 = vmul.f32 %v1506, %v1759
        %v1979 = vmul.f32 %v1506, %v1763
        %v1980 = vmul.f32 %v1506, %v1767
        %v1981 = vmul.f32 %v1506, %v1771
        %v1982 = vmul.f32 %v1506, %v1775
        %v1983 = vmul.f32 %v1506, %v1779
        %v1984 = vmul.f32 %v1506, %v1783
        %v1985 = vmul.f32 %v1506, %v1787
        %v1986 = vmul.f32 %v1506, %v1791
        %v1987 = vmul.f32 %v1506, %v1795
        %v1988 = vadd.f32 %v1292, %v1796
        %v1989 = vadd.f32 %v1293, %v1797
        %v1990 = vadd.f32 %v1294, %v1798
        %v1991 = vadd.f32 %v1295, %v1799
        %v1992 = vadd.f32 %v1296, %v1800
        %v1993 = vadd.f32 %v1297, %v1801
        %v1994 = vadd.f32 %v1298, %v1802
        %v1995 = vadd.f32 %v1299, %v1803
        %v1996 = vadd.f32 %v1300, %v1804
        %v1997 = vadd.f32 %v1301, %v1805
        %v1998 = vadd.f32 %v1302, %v1806
        %v1999 = vadd.f32 %v1303, %v1807
        %v2000 = vadd.f32 %v1304, %v1808
        %v2001 = vadd.f32 %v1305, %v1809
        %v2002 = vadd.f32 %v1306, %v1810
        %v2003 = vadd.f32 %v1307, %v1811
        %v2004 = vadd.f32 %v1308, %v1812
        %v2005 = vadd.f32 %v1309, %v1813
        %v2006 = vadd.f32 %v1310, %v1814
        %v2007 = vadd.f32 %v1311, %v1815
        %v2008 = vadd.f32 %v1312, %v1816
        %v2009 = vadd.f32 %v1313, %v1817
        %v2010 = vadd.f32 %v1314, %v1818
        %v2011 = vadd.f32 %v1315, %v1819
        %v2012 = vadd.f32 %v1316, %v1820
        %v2013 = vadd.f32 %v1317, %v1821
        %v2014 = vadd.f32 %v1318, %v1822
        %v2015 = vadd.f32 %v1319, %v1823
        %v2016 = vadd.f32 %v1320, %v1824
        %v2017 = vadd.f32 %v1321, %v1825
        %v2018 = vadd.f32 %v1322, %v1826
        %v2019 = vadd.f32 %v1323, %v1827
        %v2020 = vadd.f32 %v1324, %v1828
        %v2021 = vadd.f32 %v1325, %v1829
        %v2022 = vadd.f32 %v1326, %v1830
        %v2023 = vadd.f32 %v1327, %v1831
        %v2024 = vadd.f32 %v1328, %v1832
        %v2025 = vadd.f32 %v1329, %v1833
        %v2026 = vadd.f32 %v1330, %v1834
        %v2027 = vadd.f32 %v1331, %v1835
        %v2028 = vadd.f32 %v1332, %v1836
        %v2029 = vadd.f32 %v1333, %v1837
        %v2030 = vadd.f32 %v1334, %v1838
        %v2031 = vadd.f32 %v1335, %v1839
        %v2032 = vadd.f32 %v1336, %v1840
        %v2033 = vadd.f32 %v1337, %v1841
        %v2034 = vadd.f32 %v1338, %v1842
        %v2035 = vadd.f32 %v1339, %v1843
        %v2036 = vadd.f32 %v1340, %v1844
        %v2037 = vadd.f32 %v1341, %v1845
        %v2038 = vadd.f32 %v1342, %v1846
        %v2039 = vadd.f32 %v1343, %v1847
        %v2040 = vadd.f32 %v1344, %v1848
        %v2041 = vadd.f32 %v1345, %v1849
        %v2042 = vadd.f32 %v1346, %v1850
        %v2043 = vadd.f32 %v1347, %v1851
        %v2044 = vadd.f32 %v1348, %v1852
        %v2045 = vadd.f32 %v1349, %v1853
        %v2046 = vadd.f32 %v1350, %v1854
        %v2047 = vadd.f32 %v1351, %v1855
        %v2048 = vadd.f32 %v1352, %v1856
        %v2049 = vadd.f32 %v1353, %v1857
        %v2050 = vadd.f32 %v1354, %v1858
        %v2051 = vadd.f32 %v1355, %v1859
        %v2052 = vadd.f32 %v1356, %v1860
        %v2053 = vadd.f32 %v1357, %v1861
        %v2054 = vadd.f32 %v1358, %v1862
        %v2055 = vadd.f32 %v1359, %v1863
        %v2056 = vadd.f32 %v1360, %v1864
        %v2057 = vadd.f32 %v1361, %v1865
        %v2058 = vadd.f32 %v1362, %v1866
        %v2059 = vadd.f32 %v1363, %v1867
        %v2060 = vadd.f32 %v1364, %v1868
        %v2061 = vadd.f32 %v1365, %v1869
        %v2062 = vadd.f32 %v1366, %v1870
        %v2063 = vadd.f32 %v1367, %v1871
        %v2064 = vadd.f32 %v1368, %v1872
        %v2065 = vadd.f32 %v1369, %v1873
        %v2066 = vadd.f32 %v1370, %v1874
        %v2067 = vadd.f32 %v1371, %v1875
        %v2068 = vadd.f32 %v1372, %v1876
        %v2069 = vadd.f32 %v1373, %v1877
        %v2070 = vadd.f32 %v1374, %v1878
        %v2071 = vadd.f32 %v1375, %v1879
        %v2072 = vadd.f32 %v1376, %v1880
        %v2073 = vadd.f32 %v1377, %v1881
        %v2074 = vadd.f32 %v1378, %v1882
        %v2075 = vadd.f32 %v1379, %v1883
        %v2076 = vadd.f32 %v1380, %v1884
        %v2077 = vadd.f32 %v1381, %v1885
        %v2078 = vadd.f32 %v1382, %v1886
        %v2079 = vadd.f32 %v1383, %v1887
        %v2080 = vadd.f32 %v1384, %v1888
        %v2081 = vadd.f32 %v1385, %v1889
        %v2082 = vadd.f32 %v1386, %v1890
        %v2083 = vadd.f32 %v1387, %v1891
        %v2084 = vadd.f32 %v1388, %v1892
        %v2085 = vadd.f32 %v1389, %v1893
        %v2086 = vadd.f32 %v1390, %v1894
        %v2087 = vadd.f32 %v1391, %v1895
        %v2088 = vadd.f32 %v1392, %v1896
        %v2089 = vadd.f32 %v1393, %v1897
        %v2090 = vadd.f32 %v1394, %v1898
        %v2091 = vadd.f32 %v1395, %v1899
        %v2092 = vadd.f32 %v1396, %v1900
        %v2093 = vadd.f32 %v1397, %v1901
        %v2094 = vadd.f32 %v1398, %v1902
        %v2095 = vadd.f32 %v1399, %v1903
        %v2096 = vadd.f32 %v1400, %v1904
        %v2097 = vadd.f32 %v1401, %v1905
        %v2098 = vadd.f32 %v1402, %v1906
        %v2099 = vadd.f32 %v1403, %v1907
        %v2100 = vadd.f32 %v1404, %v1908
        %v2101 = vadd.f32 %v1405, %v1909
        %v2102 = vadd.f32 %v1406, %v1910
        %v2103 = vadd.f32 %v1407, %v1911
        %v2104 = vadd.f32 %v1408, %v1912
        %v2105 = vadd.f32 %v1409, %v1913
        %v2106 = vadd.f32 %v1410, %v1914
        %v2107 = vadd.f32 %v1411, %v1915
        %v2108 = vadd.f32 %v1412, %v1916
        %v2109 = vadd.f32 %v1413, %v1917
        %v2110 = vadd.f32 %v1414, %v1918
        %v2111 = vadd.f32 %v1415, %v1919
        %v2112 = vadd.f32 %v1416, %v1920
        %v2113 = vadd.f32 %v1417, %v1921
        %v2114 = vadd.f32 %v1418, %v1922
        %v2115 = vadd.f32 %v1419, %v1923
        %v2116 = vadd.f32 %v1420, %v1924
        %v2117 = vadd.f32 %v1421, %v1925
        %v2118 = vadd.f32 %v1422, %v1926
        %v2119 = vadd.f32 %v1423, %v1927
        %v2120 = vadd.f32 %v1424, %v1928
        %v2121 = vadd.f32 %v1425, %v1929
        %v2122 = vadd.f32 %v1426, %v1930
        %v2123 = vadd.f32 %v1427, %v1931
        %v2124 = vadd.f32 %v1428, %v1932
        %v2125 = vadd.f32 %v1429, %v1933
        %v2126 = vadd.f32 %v1430, %v1934
        %v2127 = vadd.f32 %v1431, %v1935
        %v2128 = vadd.f32 %v1432, %v1936
        %v2129 = vadd.f32 %v1433, %v1937
        %v2130 = vadd.f32 %v1434, %v1938
        %v2131 = vadd.f32 %v1435, %v1939
        %v2132 = vadd.f32 %v1436, %v1940
        %v2133 = vadd.f32 %v1437, %v1941
        %v2134 = vadd.f32 %v1438, %v1942
        %v2135 = vadd.f32 %v1439, %v1943
        %v2136 = vadd.f32 %v1440, %v1944
        %v2137 = vadd.f32 %v1441, %v1945
        %v2138 = vadd.f32 %v1442, %v1946
        %v2139 = vadd.f32 %v1443, %v1947
        %v2140 = vadd.f32 %v1444, %v1948
        %v2141 = vadd.f32 %v1445, %v1949
        %v2142 = vadd.f32 %v1446, %v1950
        %v2143 = vadd.f32 %v1447, %v1951
        %v2144 = vadd.f32 %v1448, %v1952
        %v2145 = vadd.f32 %v1449, %v1953
        %v2146 = vadd.f32 %v1450, %v1954
        %v2147 = vadd.f32 %v1451, %v1955
        %v2148 = vadd.f32 %v1452, %v1956
        %v2149 = vadd.f32 %v1453, %v1957
        %v2150 = vadd.f32 %v1454, %v1958
        %v2151 = vadd.f32 %v1455, %v1959
        %v2152 = vadd.f32 %v1456, %v1960
        %v2153 = vadd.f32 %v1457, %v1961
        %v2154 = vadd.f32 %v1458, %v1962
        %v2155 = vadd.f32 %v1459, %v1963
        %v2156 = vadd.f32 %v1460, %v1964
        %v2157 = vadd.f32 %v1461, %v1965
        %v2158 = vadd.f32 %v1462, %v1966
        %v2159 = vadd.f32 %v1463, %v1967
        %v2160 = vadd.f32 %v1464, %v1968
        %v2161 = vadd.f32 %v1465, %v1969
        %v2162 = vadd.f32 %v1466, %v1970
        %v2163 = vadd.f32 %v1467, %v1971
        %v2164 = vadd.f32 %v1468, %v1972
        %v2165 = vadd.f32 %v1469, %v1973
        %v2166 = vadd.f32 %v1470, %v1974
        %v2167 = vadd.f32 %v1471, %v1975
        %v2168 = vadd.f32 %v1472, %v1976
        %v2169 = vadd.f32 %v1473, %v1977
        %v2170 = vadd.f32 %v1474, %v1978
        %v2171 = vadd.f32 %v1475, %v1979
        %v2172 = vadd.f32 %v1476, %v1980
        %v2173 = vadd.f32 %v1477, %v1981
        %v2174 = vadd.f32 %v1478, %v1982
        %v2175 = vadd.f32 %v1479, %v1983
        %v2176 = vadd.f32 %v1480, %v1984
        %v2177 = vadd.f32 %v1481, %v1985
        %v2178 = vadd.f32 %v1482, %v1986
        %v2179 = vadd.f32 %v1483, %v1987
        %2180 = vset.pattern.permute.xlu0 3
        %2181 = vperm.xlu0 %2180, %v240
        %v2182 = vpop.permute.xlu0 %2181
        %2184 = vset.pattern.permute.xlu0 3
        %2185 = vperm.xlu0 %2184, %v241
        %v2186 = vpop.permute.xlu0 %2185
        %2188 = vset.pattern.permute.xlu0 3
        %2189 = vperm.xlu0 %2188, %v242
        %v2190 = vpop.permute.xlu0 %2189
        %2192 = vset.pattern.permute.xlu0 3
        %2193 = vperm.xlu0 %2192, %v243
        %v2194 = vpop.permute.xlu0 %2193
        %2196 = vset.pattern.permute.xlu0 3
        %2197 = vperm.xlu0 %2196, %v244
        %v2198 = vpop.permute.xlu0 %2197
        %2200 = vset.pattern.permute.xlu0 3
        %2201 = vperm.xlu0 %2200, %v245
        %v2202 = vpop.permute.xlu0 %2201
        %v2204 = vadd.f32 %v1988, %v2182
        %v2205 = vadd.f32 %v1989, %v2182
        %v2206 = vadd.f32 %v1990, %v2182
        %v2207 = vadd.f32 %v1991, %v2182
        %v2208 = vadd.f32 %v1992, %v2182
        %v2209 = vadd.f32 %v1993, %v2182
        %v2210 = vadd.f32 %v1994, %v2182
        %v2211 = vadd.f32 %v1995, %v2182
        %v2212 = vadd.f32 %v1996, %v2182
        %v2213 = vadd.f32 %v1997, %v2182
        %v2214 = vadd.f32 %v1998, %v2182
        %v2215 = vadd.f32 %v1999, %v2182
        %v2216 = vadd.f32 %v2000, %v2182
        %v2217 = vadd.f32 %v2001, %v2182
        %v2218 = vadd.f32 %v2002, %v2182
        %v2219 = vadd.f32 %v2003, %v2182
        %v2220 = vadd.f32 %v2004, %v2182
        %v2221 = vadd.f32 %v2005, %v2182
        %v2222 = vadd.f32 %v2006, %v2182
        %v2223 = vadd.f32 %v2007, %v2182
        %v2224 = vadd.f32 %v2008, %v2182
        %v2225 = vadd.f32 %v2009, %v2182
        %v2226 = vadd.f32 %v2010, %v2182
        %v2227 = vadd.f32 %v2011, %v2182
        %v2228 = vadd.f32 %v2012, %v2182
        %v2229 = vadd.f32 %v2013, %v2182
        %v2230 = vadd.f32 %v2014, %v2182
        %v2231 = vadd.f32 %v2015, %v2182
        %v2232 = vadd.f32 %v2016, %v2182
        %v2233 = vadd.f32 %v2017, %v2182
        %v2234 = vadd.f32 %v2018, %v2182
        %v2235 = vadd.f32 %v2019, %v2182
        %v2236 = vadd.f32 %v2020, %v2186
        %v2237 = vadd.f32 %v2021, %v2186
        %v2238 = vadd.f32 %v2022, %v2186
        %v2239 = vadd.f32 %v2023, %v2186
        %v2240 = vadd.f32 %v2024, %v2186
        %v2241 = vadd.f32 %v2025, %v2186
        %v2242 = vadd.f32 %v2026, %v2186
        %v2243 = vadd.f32 %v2027, %v2186
        %v2244 = vadd.f32 %v2028, %v2186
        %v2245 = vadd.f32 %v2029, %v2186
        %v2246 = vadd.f32 %v2030, %v2186
        %v2247 = vadd.f32 %v2031, %v2186
        %v2248 = vadd.f32 %v2032, %v2186
        %v2249 = vadd.f32 %v2033, %v2186
        %v2250 = vadd.f32 %v2034, %v2186
        %v2251 = vadd.f32 %v2035, %v2186
        %v2252 = vadd.f32 %v2036, %v2186
        %v2253 = vadd.f32 %v2037, %v2186
        %v2254 = vadd.f32 %v2038, %v2186
        %v2255 = vadd.f32 %v2039, %v2186
        %v2256 = vadd.f32 %v2040, %v2186
        %v2257 = vadd.f32 %v2041, %v2186
        %v2258 = vadd.f32 %v2042, %v2186
        %v2259 = vadd.f32 %v2043, %v2186
        %v2260 = vadd.f32 %v2044, %v2186
        %v2261 = vadd.f32 %v2045, %v2186
        %v2262 = vadd.f32 %v2046, %v2186
        %v2263 = vadd.f32 %v2047, %v2186
        %v2264 = vadd.f32 %v2048, %v2186
        %v2265 = vadd.f32 %v2049, %v2186
        %v2266 = vadd.f32 %v2050, %v2186
        %v2267 = vadd.f32 %v2051, %v2186
        %v2268 = vadd.f32 %v2052, %v2190
        %v2269 = vadd.f32 %v2053, %v2190
        %v2270 = vadd.f32 %v2054, %v2190
        %v2271 = vadd.f32 %v2055, %v2190
        %v2272 = vadd.f32 %v2056, %v2190
        %v2273 = vadd.f32 %v2057, %v2190
        %v2274 = vadd.f32 %v2058, %v2190
        %v2275 = vadd.f32 %v2059, %v2190
        %v2276 = vadd.f32 %v2060, %v2190
        %v2277 = vadd.f32 %v2061, %v2190
        %v2278 = vadd.f32 %v2062, %v2190
        %v2279 = vadd.f32 %v2063, %v2190
        %v2280 = vadd.f32 %v2064, %v2190
        %v2281 = vadd.f32 %v2065, %v2190
        %v2282 = vadd.f32 %v2066, %v2190
        %v2283 = vadd.f32 %v2067, %v2190
        %v2284 = vadd.f32 %v2068, %v2190
        %v2285 = vadd.f32 %v2069, %v2190
        %v2286 = vadd.f32 %v2070, %v2190
        %v2287 = vadd.f32 %v2071, %v2190
        %v2288 = vadd.f32 %v2072, %v2190
        %v2289 = vadd.f32 %v2073, %v2190
        %v2290 = vadd.f32 %v2074, %v2190
        %v2291 = vadd.f32 %v2075, %v2190
        %v2292 = vadd.f32 %v2076, %v2190
        %v2293 = vadd.f32 %v2077, %v2190
        %v2294 = vadd.f32 %v2078, %v2190
        %v2295 = vadd.f32 %v2079, %v2190
        %v2296 = vadd.f32 %v2080, %v2190
        %v2297 = vadd.f32 %v2081, %v2190
        %v2298 = vadd.f32 %v2082, %v2190
        %v2299 = vadd.f32 %v2083, %v2190
        %v2300 = vadd.f32 %v2084, %v2194
        %v2301 = vadd.f32 %v2085, %v2194
        %v2302 = vadd.f32 %v2086, %v2194
        %v2303 = vadd.f32 %v2087, %v2194
        %v2304 = vadd.f32 %v2088, %v2194
        %v2305 = vadd.f32 %v2089, %v2194
        %v2306 = vadd.f32 %v2090, %v2194
        %v2307 = vadd.f32 %v2091, %v2194
        %v2308 = vadd.f32 %v2092, %v2194
        %v2309 = vadd.f32 %v2093, %v2194
        %v2310 = vadd.f32 %v2094, %v2194
        %v2311 = vadd.f32 %v2095, %v2194
        %v2312 = vadd.f32 %v2096, %v2194
        %v2313 = vadd.f32 %v2097, %v2194
        %v2314 = vadd.f32 %v2098, %v2194
        %v2315 = vadd.f32 %v2099, %v2194
        %v2316 = vadd.f32 %v2100, %v2194
        %v2317 = vadd.f32 %v2101, %v2194
        %v2318 = vadd.f32 %v2102, %v2194
        %v2319 = vadd.f32 %v2103, %v2194
        %v2320 = vadd.f32 %v2104, %v2194
        %v2321 = vadd.f32 %v2105, %v2194
        %v2322 = vadd.f32 %v2106, %v2194
        %v2323 = vadd.f32 %v2107, %v2194
        %v2324 = vadd.f32 %v2108, %v2194
        %v2325 = vadd.f32 %v2109, %v2194
        %v2326 = vadd.f32 %v2110, %v2194
        %v2327 = vadd.f32 %v2111, %v2194
        %v2328 = vadd.f32 %v2112, %v2194
        %v2329 = vadd.f32 %v2113, %v2194
        %v2330 = vadd.f32 %v2114, %v2194
        %v2331 = vadd.f32 %v2115, %v2194
        %v2332 = vadd.f32 %v2116, %v2198
        %v2333 = vadd.f32 %v2117, %v2198
        %v2334 = vadd.f32 %v2118, %v2198
        %v2335 = vadd.f32 %v2119, %v2198
        %v2336 = vadd.f32 %v2120, %v2198
        %v2337 = vadd.f32 %v2121, %v2198
        %v2338 = vadd.f32 %v2122, %v2198
        %v2339 = vadd.f32 %v2123, %v2198
        %v2340 = vadd.f32 %v2124, %v2198
        %v2341 = vadd.f32 %v2125, %v2198
        %v2342 = vadd.f32 %v2126, %v2198
        %v2343 = vadd.f32 %v2127, %v2198
        %v2344 = vadd.f32 %v2128, %v2198
        %v2345 = vadd.f32 %v2129, %v2198
        %v2346 = vadd.f32 %v2130, %v2198
        %v2347 = vadd.f32 %v2131, %v2198
        %v2348 = vadd.f32 %v2132, %v2198
        %v2349 = vadd.f32 %v2133, %v2198
        %v2350 = vadd.f32 %v2134, %v2198
        %v2351 = vadd.f32 %v2135, %v2198
        %v2352 = vadd.f32 %v2136, %v2198
        %v2353 = vadd.f32 %v2137, %v2198
        %v2354 = vadd.f32 %v2138, %v2198
        %v2355 = vadd.f32 %v2139, %v2198
        %v2356 = vadd.f32 %v2140, %v2198
        %v2357 = vadd.f32 %v2141, %v2198
        %v2358 = vadd.f32 %v2142, %v2198
        %v2359 = vadd.f32 %v2143, %v2198
        %v2360 = vadd.f32 %v2144, %v2198
        %v2361 = vadd.f32 %v2145, %v2198
        %v2362 = vadd.f32 %v2146, %v2198
        %v2363 = vadd.f32 %v2147, %v2198
        %v2364 = vadd.f32 %v2148, %v2202
        %v2365 = vadd.f32 %v2149, %v2202
        %v2366 = vadd.f32 %v2150, %v2202
        %v2367 = vadd.f32 %v2151, %v2202
        %v2368 = vadd.f32 %v2152, %v2202
        %v2369 = vadd.f32 %v2153, %v2202
        %v2370 = vadd.f32 %v2154, %v2202
        %v2371 = vadd.f32 %v2155, %v2202
        %v2372 = vadd.f32 %v2156, %v2202
        %v2373 = vadd.f32 %v2157, %v2202
        %v2374 = vadd.f32 %v2158, %v2202
        %v2375 = vadd.f32 %v2159, %v2202
        %v2376 = vadd.f32 %v2160, %v2202
        %v2377 = vadd.f32 %v2161, %v2202
        %v2378 = vadd.f32 %v2162, %v2202
        %v2379 = vadd.f32 %v2163, %v2202
        %v2380 = vadd.f32 %v2164, %v2202
        %v2381 = vadd.f32 %v2165, %v2202
        %v2382 = vadd.f32 %v2166, %v2202
        %v2383 = vadd.f32 %v2167, %v2202
        %v2384 = vadd.f32 %v2168, %v2202
        %v2385 = vadd.f32 %v2169, %v2202
        %v2386 = vadd.f32 %v2170, %v2202
        %v2387 = vadd.f32 %v2171, %v2202
        %v2388 = vadd.f32 %v2172, %v2202
        %v2389 = vadd.f32 %v2173, %v2202
        %v2390 = vadd.f32 %v2174, %v2202
        %v2391 = vadd.f32 %v2175, %v2202
        %v2392 = vadd.f32 %v2176, %v2202
        %v2393 = vadd.f32 %v2177, %v2202
        %v2394 = vadd.f32 %v2178, %v2202
        %v2395 = vadd.f32 %v2179, %v2202
        %2396 = vst [vmem:[%s215] sm:$0xff] %v2204
        %2397 = vst [vmem:[%s215 + $0x8] sm:$0xff] %v2205
        %2398 = vst [vmem:[%s215 + $0x10] sm:$0xff] %v2206
        %2399 = vst [vmem:[%s215 + $0x18] sm:$0xff] %v2207
        %2400 = vst [vmem:[%s215 + $0x20] sm:$0xff] %v2208
        %2401 = vst [vmem:[%s215 + $0x28] sm:$0xff] %v2209
        %2402 = vst [vmem:[%s215 + $0x30] sm:$0xff] %v2210
        %2403 = vst [vmem:[%s215 + $0x38] sm:$0xff] %v2211
        %2404 = vst [vmem:[%s215 + $0x40] sm:$0xff] %v2212
        %2405 = vst [vmem:[%s215 + $0x48] sm:$0xff] %v2213
        %2406 = vst [vmem:[%s215 + $0x50] sm:$0xff] %v2214
        %2407 = vst [vmem:[%s215 + $0x58] sm:$0xff] %v2215
        %2408 = vst [vmem:[%s215 + $0x60] sm:$0xff] %v2216
        %2409 = vst [vmem:[%s215 + $0x68] sm:$0xff] %v2217
        %2410 = vst [vmem:[%s215 + $0x70] sm:$0xff] %v2218
        %2411 = vst [vmem:[%s215 + $0x78] sm:$0xff] %v2219
        %2412 = vst [vmem:[%s215 + $0x80] sm:$0xff] %v2220
        %2413 = vst [vmem:[%s215 + $0x88] sm:$0xff] %v2221
        %2414 = vst [vmem:[%s215 + $0x90] sm:$0xff] %v2222
        %2415 = vst [vmem:[%s215 + $0x98] sm:$0xff] %v2223
        %2416 = vst [vmem:[%s215 + $0xa0] sm:$0xff] %v2224
        %2417 = vst [vmem:[%s215 + $0xa8] sm:$0xff] %v2225
        %2418 = vst [vmem:[%s215 + $0xb0] sm:$0xff] %v2226
        %2419 = vst [vmem:[%s215 + $0xb8] sm:$0xff] %v2227
        %2420 = vst [vmem:[%s215 + $0xc0] sm:$0xff] %v2228
        %2421 = vst [vmem:[%s215 + $0xc8] sm:$0xff] %v2229
        %2422 = vst [vmem:[%s215 + $0xd0] sm:$0xff] %v2230
        %2423 = vst [vmem:[%s215 + $0xd8] sm:$0xff] %v2231
        %2424 = vst [vmem:[%s215 + $0xe0] sm:$0xff] %v2232
        %2425 = vst [vmem:[%s215 + $0xe8] sm:$0xff] %v2233
        %2426 = vst [vmem:[%s215 + $0xf0] sm:$0xff] %v2234
        %2427 = vst [vmem:[%s215 + $0xf8] sm:$0xff] %v2235
        %2428 = vst [vmem:[%s215 + $0x100] sm:$0xff] %v2236
        %2429 = vst [vmem:[%s215 + $0x108] sm:$0xff] %v2237
        %2430 = vst [vmem:[%s215 + $0x110] sm:$0xff] %v2238
        %2431 = vst [vmem:[%s215 + $0x118] sm:$0xff] %v2239
        %2432 = vst [vmem:[%s215 + $0x120] sm:$0xff] %v2240
        %2433 = vst [vmem:[%s215 + $0x128] sm:$0xff] %v2241
        %2434 = vst [vmem:[%s215 + $0x130] sm:$0xff] %v2242
        %2435 = vst [vmem:[%s215 + $0x138] sm:$0xff] %v2243
        %2436 = vst [vmem:[%s215 + $0x140] sm:$0xff] %v2244
        %2437 = vst [vmem:[%s215 + $0x148] sm:$0xff] %v2245
        %2438 = vst [vmem:[%s215 + $0x150] sm:$0xff] %v2246
        %2439 = vst [vmem:[%s215 + $0x158] sm:$0xff] %v2247
        %2440 = vst [vmem:[%s215 + $0x160] sm:$0xff] %v2248
        %2441 = vst [vmem:[%s215 + $0x168] sm:$0xff] %v2249
        %2442 = vst [vmem:[%s215 + $0x170] sm:$0xff] %v2250
        %2443 = vst [vmem:[%s215 + $0x178] sm:$0xff] %v2251
        %2444 = vst [vmem:[%s215 + $0x180] sm:$0xff] %v2252
        %2445 = vst [vmem:[%s215 + $0x188] sm:$0xff] %v2253
        %2446 = vst [vmem:[%s215 + $0x190] sm:$0xff] %v2254
        %2447 = vst [vmem:[%s215 + $0x198] sm:$0xff] %v2255
        %2448 = vst [vmem:[%s215 + $0x1a0] sm:$0xff] %v2256
        %2449 = vst [vmem:[%s215 + $0x1a8] sm:$0xff] %v2257
        %2450 = vst [vmem:[%s215 + $0x1b0] sm:$0xff] %v2258
        %2451 = vst [vmem:[%s215 + $0x1b8] sm:$0xff] %v2259
        %2452 = vst [vmem:[%s215 + $0x1c0] sm:$0xff] %v2260
        %2453 = vst [vmem:[%s215 + $0x1c8] sm:$0xff] %v2261
        %2454 = vst [vmem:[%s215 + $0x1d0] sm:$0xff] %v2262
        %2455 = vst [vmem:[%s215 + $0x1d8] sm:$0xff] %v2263
        %2456 = vst [vmem:[%s215 + $0x1e0] sm:$0xff] %v2264
        %2457 = vst [vmem:[%s215 + $0x1e8] sm:$0xff] %v2265
        %2458 = vst [vmem:[%s215 + $0x1f0] sm:$0xff] %v2266
        %2459 = vst [vmem:[%s215 + $0x1f8] sm:$0xff] %v2267
        %2460 = vst [vmem:[%s215 + $0x200] sm:$0xff] %v2268
        %2461 = vst [vmem:[%s215 + $0x208] sm:$0xff] %v2269
        %2462 = vst [vmem:[%s215 + $0x210] sm:$0xff] %v2270
        %2463 = vst [vmem:[%s215 + $0x218] sm:$0xff] %v2271
        %2464 = vst [vmem:[%s215 + $0x220] sm:$0xff] %v2272
        %2465 = vst [vmem:[%s215 + $0x228] sm:$0xff] %v2273
        %2466 = vst [vmem:[%s215 + $0x230] sm:$0xff] %v2274
        %2467 = vst [vmem:[%s215 + $0x238] sm:$0xff] %v2275
        %2468 = vst [vmem:[%s215 + $0x240] sm:$0xff] %v2276
        %2469 = vst [vmem:[%s215 + $0x248] sm:$0xff] %v2277
        %2470 = vst [vmem:[%s215 + $0x250] sm:$0xff] %v2278
        %2471 = vst [vmem:[%s215 + $0x258] sm:$0xff] %v2279
        %2472 = vst [vmem:[%s215 + $0x260] sm:$0xff] %v2280
        %2473 = vst [vmem:[%s215 + $0x268] sm:$0xff] %v2281
        %2474 = vst [vmem:[%s215 + $0x270] sm:$0xff] %v2282
        %2475 = vst [vmem:[%s215 + $0x278] sm:$0xff] %v2283
        %2476 = vst [vmem:[%s215 + $0x280] sm:$0xff] %v2284
        %2477 = vst [vmem:[%s215 + $0x288] sm:$0xff] %v2285
        %2478 = vst [vmem:[%s215 + $0x290] sm:$0xff] %v2286
        %2479 = vst [vmem:[%s215 + $0x298] sm:$0xff] %v2287
        %2480 = vst [vmem:[%s215 + $0x2a0] sm:$0xff] %v2288
        %2481 = vst [vmem:[%s215 + $0x2a8] sm:$0xff] %v2289
        %2482 = vst [vmem:[%s215 + $0x2b0] sm:$0xff] %v2290
        %2483 = vst [vmem:[%s215 + $0x2b8] sm:$0xff] %v2291
        %2484 = vst [vmem:[%s215 + $0x2c0] sm:$0xff] %v2292
        %2485 = vst [vmem:[%s215 + $0x2c8] sm:$0xff] %v2293
        %2486 = vst [vmem:[%s215 + $0x2d0] sm:$0xff] %v2294
        %2487 = vst [vmem:[%s215 + $0x2d8] sm:$0xff] %v2295
        %2488 = vst [vmem:[%s215 + $0x2e0] sm:$0xff] %v2296
        %2489 = vst [vmem:[%s215 + $0x2e8] sm:$0xff] %v2297
        %2490 = vst [vmem:[%s215 + $0x2f0] sm:$0xff] %v2298
        %2491 = vst [vmem:[%s215 + $0x2f8] sm:$0xff] %v2299
        %2492 = vst [vmem:[%s215 + $0x300] sm:$0xff] %v2300
        %2493 = vst [vmem:[%s215 + $0x308] sm:$0xff] %v2301
        %2494 = vst [vmem:[%s215 + $0x310] sm:$0xff] %v2302
        %2495 = vst [vmem:[%s215 + $0x318] sm:$0xff] %v2303
        %2496 = vst [vmem:[%s215 + $0x320] sm:$0xff] %v2304
        %2497 = vst [vmem:[%s215 + $0x328] sm:$0xff] %v2305
        %2498 = vst [vmem:[%s215 + $0x330] sm:$0xff] %v2306
        %2499 = vst [vmem:[%s215 + $0x338] sm:$0xff] %v2307
        %2500 = vst [vmem:[%s215 + $0x340] sm:$0xff] %v2308
        %2501 = vst [vmem:[%s215 + $0x348] sm:$0xff] %v2309
        %2502 = vst [vmem:[%s215 + $0x350] sm:$0xff] %v2310
        %2503 = vst [vmem:[%s215 + $0x358] sm:$0xff] %v2311
        %2504 = vst [vmem:[%s215 + $0x360] sm:$0xff] %v2312
        %2505 = vst [vmem:[%s215 + $0x368] sm:$0xff] %v2313
        %2506 = vst [vmem:[%s215 + $0x370] sm:$0xff] %v2314
        %2507 = vst [vmem:[%s215 + $0x378] sm:$0xff] %v2315
        %2508 = vst [vmem:[%s215 + $0x380] sm:$0xff] %v2316
        %2509 = vst [vmem:[%s215 + $0x388] sm:$0xff] %v2317
        %2510 = vst [vmem:[%s215 + $0x390] sm:$0xff] %v2318
        %2511 = vst [vmem:[%s215 + $0x398] sm:$0xff] %v2319
        %2512 = vst [vmem:[%s215 + $0x3a0] sm:$0xff] %v2320
        %2513 = vst [vmem:[%s215 + $0x3a8] sm:$0xff] %v2321
        %2514 = vst [vmem:[%s215 + $0x3b0] sm:$0xff] %v2322
        %2515 = vst [vmem:[%s215 + $0x3b8] sm:$0xff] %v2323
        %2516 = vst [vmem:[%s215 + $0x3c0] sm:$0xff] %v2324
        %2517 = vst [vmem:[%s215 + $0x3c8] sm:$0xff] %v2325
        %2518 = vst [vmem:[%s215 + $0x3d0] sm:$0xff] %v2326
        %2519 = vst [vmem:[%s215 + $0x3d8] sm:$0xff] %v2327
        %2520 = vst [vmem:[%s215 + $0x3e0] sm:$0xff] %v2328
        %2521 = vst [vmem:[%s215 + $0x3e8] sm:$0xff] %v2329
        %2522 = vst [vmem:[%s215 + $0x3f0] sm:$0xff] %v2330
        %2523 = vst [vmem:[%s215 + $0x3f8] sm:$0xff] %v2331
        %2524 = vst [vmem:[%s215 + $0x400] sm:$0xff] %v2332
        %2525 = vst [vmem:[%s215 + $0x408] sm:$0xff] %v2333
        %2526 = vst [vmem:[%s215 + $0x410] sm:$0xff] %v2334
        %2527 = vst [vmem:[%s215 + $0x418] sm:$0xff] %v2335
        %2528 = vst [vmem:[%s215 + $0x420] sm:$0xff] %v2336
        %2529 = vst [vmem:[%s215 + $0x428] sm:$0xff] %v2337
        %2530 = vst [vmem:[%s215 + $0x430] sm:$0xff] %v2338
        %2531 = vst [vmem:[%s215 + $0x438] sm:$0xff] %v2339
        %2532 = vst [vmem:[%s215 + $0x440] sm:$0xff] %v2340
        %2533 = vst [vmem:[%s215 + $0x448] sm:$0xff] %v2341
        %2534 = vst [vmem:[%s215 + $0x450] sm:$0xff] %v2342
        %2535 = vst [vmem:[%s215 + $0x458] sm:$0xff] %v2343
        %2536 = vst [vmem:[%s215 + $0x460] sm:$0xff] %v2344
        %2537 = vst [vmem:[%s215 + $0x468] sm:$0xff] %v2345
        %2538 = vst [vmem:[%s215 + $0x470] sm:$0xff] %v2346
        %2539 = vst [vmem:[%s215 + $0x478] sm:$0xff] %v2347
        %2540 = vst [vmem:[%s215 + $0x480] sm:$0xff] %v2348
        %2541 = vst [vmem:[%s215 + $0x488] sm:$0xff] %v2349
        %2542 = vst [vmem:[%s215 + $0x490] sm:$0xff] %v2350
        %2543 = vst [vmem:[%s215 + $0x498] sm:$0xff] %v2351
        %2544 = vst [vmem:[%s215 + $0x4a0] sm:$0xff] %v2352
        %2545 = vst [vmem:[%s215 + $0x4a8] sm:$0xff] %v2353
        %2546 = vst [vmem:[%s215 + $0x4b0] sm:$0xff] %v2354
        %2547 = vst [vmem:[%s215 + $0x4b8] sm:$0xff] %v2355
        %2548 = vst [vmem:[%s215 + $0x4c0] sm:$0xff] %v2356
        %2549 = vst [vmem:[%s215 + $0x4c8] sm:$0xff] %v2357
        %2550 = vst [vmem:[%s215 + $0x4d0] sm:$0xff] %v2358
        %2551 = vst [vmem:[%s215 + $0x4d8] sm:$0xff] %v2359
        %2552 = vst [vmem:[%s215 + $0x4e0] sm:$0xff] %v2360
        %2553 = vst [vmem:[%s215 + $0x4e8] sm:$0xff] %v2361
        %2554 = vst [vmem:[%s215 + $0x4f0] sm:$0xff] %v2362
        %2555 = vst [vmem:[%s215 + $0x4f8] sm:$0xff] %v2363
        %2556 = vst [vmem:[%s215 + $0x500] sm:$0xff] %v2364
        %2557 = vst [vmem:[%s215 + $0x508] sm:$0xff] %v2365
        %2558 = vst [vmem:[%s215 + $0x510] sm:$0xff] %v2366
        %2559 = vst [vmem:[%s215 + $0x518] sm:$0xff] %v2367
        %2560 = vst [vmem:[%s215 + $0x520] sm:$0xff] %v2368
        %2561 = vst [vmem:[%s215 + $0x528] sm:$0xff] %v2369
        %2562 = vst [vmem:[%s215 + $0x530] sm:$0xff] %v2370
        %2563 = vst [vmem:[%s215 + $0x538] sm:$0xff] %v2371
        %2564 = vst [vmem:[%s215 + $0x540] sm:$0xff] %v2372
        %2565 = vst [vmem:[%s215 + $0x548] sm:$0xff] %v2373
        %2566 = vst [vmem:[%s215 + $0x550] sm:$0xff] %v2374
        %2567 = vst [vmem:[%s215 + $0x558] sm:$0xff] %v2375
        %2568 = vst [vmem:[%s215 + $0x560] sm:$0xff] %v2376
        %2569 = vst [vmem:[%s215 + $0x568] sm:$0xff] %v2377
        %2570 = vst [vmem:[%s215 + $0x570] sm:$0xff] %v2378
        %2571 = vst [vmem:[%s215 + $0x578] sm:$0xff] %v2379
        %2572 = vst [vmem:[%s215 + $0x580] sm:$0xff] %v2380
        %2573 = vst [vmem:[%s215 + $0x588] sm:$0xff] %v2381
        %2574 = vst [vmem:[%s215 + $0x590] sm:$0xff] %v2382
        %2575 = vst [vmem:[%s215 + $0x598] sm:$0xff] %v2383
        %2576 = vst [vmem:[%s215 + $0x5a0] sm:$0xff] %v2384
        %2577 = vst [vmem:[%s215 + $0x5a8] sm:$0xff] %v2385
        %2578 = vst [vmem:[%s215 + $0x5b0] sm:$0xff] %v2386
        %2579 = vst [vmem:[%s215 + $0x5b8] sm:$0xff] %v2387
        %2580 = vst [vmem:[%s215 + $0x5c0] sm:$0xff] %v2388
        %2581 = vst [vmem:[%s215 + $0x5c8] sm:$0xff] %v2389
        %2582 = vst [vmem:[%s215 + $0x5d0] sm:$0xff] %v2390
        %2583 = vst [vmem:[%s215 + $0x5d8] sm:$0xff] %v2391
        %2584 = vst [vmem:[%s215 + $0x5e0] sm:$0xff] %v2392
        %2585 = vst [vmem:[%s215 + $0x5e8] sm:$0xff] %v2393
        %2586 = vst [vmem:[%s215 + $0x5f0] sm:$0xff] %v2394
        %2587 = vst [vmem:[%s215 + $0x5f8] sm:$0xff] %v2395
        %s2588 = sand.u32 %s115, 1
        %s2589 = scalar_lea.sflag [#allocation3], %s2588
        %s2590 = sand.u32 %s115, 1
        %s2591 = smul.addr %s2590, 1536
        %s2592 = scalar_lea.vmem [#allocation5], %s2591
        // Predicated region
        $region37: #{tpu_custom_call.1} parent=31 // pred_check
          %p2593 = pneg %p125
        $region38: #{tpu_custom_call.1} parent=31 // pred_check_branch
          %2595 = sbr.rel (%p2593) target = $region40
        $region39: #{tpu_custom_call.1} parent=31 // pred_region
          %s2596 = smul.u32 32, %s23
          %s2598 = ssub.s32 24576, 24576
          %2599 = vsyncadd %s2589, %s2598
          %s2600 = smul.addr %s22, 192
          %s2601 = sadd.s32 %s2596, %s2600
          %s2602 = smul.addr %s2601, 128
          %s2603 = scalar_lea.hbm %s3, %s2602
          %s2604 = sshll.u32 %s2592, 4
          %s2605 = int_to_ptr.vmem [resolvable:$true] %s2604
          %2610 = dma.vmem_to_hbm [thread:$0]  %s2605, 24576, %s2603, %s2589, 4096, 4096, 256
        $region40: #{tpu_custom_call.1} parent=31 // pred_fallthru
          _
      $region32: #{tpu_custom_call.1} parent=5 // pred_fallthru
        _
      %p2611 = scmp.le.s32.totalorder 2, %s13
      // Predicated region
      $region41: #{tpu_custom_call.1} parent=5 // pred_check
        %p2612 = pneg %p2611
      $region42: #{tpu_custom_call.1} parent=5 // pred_check_branch
        %2614 = sbr.rel (%p2612) target = $region44
      $region43: #{tpu_custom_call.1} parent=5 // pred_region
        %s2615 = ssub.s32 %s13, 2
        // Predicated region
        $region45: #{tpu_custom_call.1} parent=43 // pred_check
          %p2616 = pneg %p131
        $region46: #{tpu_custom_call.1} parent=43 // pred_check_branch
          %2618 = sbr.rel (%p2616) target = $region48
        $region47: #{tpu_custom_call.1} parent=43 // pred_region
          %s2619 = sand.u32 %s116, 1
          %s2620 = scalar_lea.sflag [#allocation3], %s2619
          %s2621 = sand.u32 %s116, 1
          %s2622 = smul.addr %s2621, 1536
          %s2623 = scalar_lea.vmem [#allocation5], %s2622
          %2624 = dma.done %s2620, 24576
        $region48: #{tpu_custom_call.1} parent=43 // pred_fallthru
          _
      $region44: #{tpu_custom_call.1} parent=5 // pred_fallthru
        _
    $region6: #{tpu_custom_call.1} parent=1 // loop_footer
      %s17 = sadd.s32 1, %s13
    $region7: #{tpu_custom_call.1} parent=1 // loop_footer_branch
      %12 = sbr.rel target = $region3
    $region8: #{tpu_custom_call.1} parent=1 // loop_exit
      _
    %2625 = vsyncpa [#allocation3], 1
    %s2626 = scalar_lea.sflag [#allocation3], 1
    %2627 = vsyncpa %s2626, 1
    %2628 = vsyncpa [#allocation4], 1
    %s2629 = scalar_lea.sflag [#allocation4], 1
    %2630 = vsyncpa %s2629, 1

</llo_original>
